<compile_context>
chip_gen: v5e
topology: v5e:2x2
jax: 0.10.0
libtpu: 0.0.40
codegen_flags: <defaults>
</compile_context>

<pallas_src>
import functools

import jax
import jax.numpy as jnp
from jax.experimental import pallas as pl
from jax.experimental.pallas import tpu as pltpu


def basic_block_kernel(x_ref, w1_ref, w2_ref, o_ref, im2col_ref, out1_pad_ref,
                       *, row_stride, KH, KW, NHW):
    # x_ref       : (Cin, NHW + LANE_PAD)    VMEM  (channel-major, spatial on lanes)
    # w1_ref      : (P, KH*KW*Cin)           VMEM  (fused-tap weight slab)
    # w2_ref      : (P, KH*KW*P)             VMEM
    # o_ref       : (P, NHW)                 VMEM  (full grid; wrapper crops)
    # im2col_ref  : (KH*KW*Cin, NHW)         VMEM scratch (reused for both convs)
    # out1_pad_ref: (P, NHW + LANE_PAD)      VMEM scratch (conv1 output, padded)
    P = w1_ref.shape[0]
    Cin = x_ref.shape[0]
    lane_pad = x_ref.shape[1] - NHW

    x = x_ref[...].astype(jnp.float32)                     # (Cin, NHW + pad)

    # ---- im2col pack for conv1: 25 lane-shifted copies, done once ----
    for kh in range(KH):
        for kw in range(KW):
            t = kh * KW + kw
            s = kh * row_stride + kw
            im2col_ref[t * Cin:(t + 1) * Cin, :] = x[:, s:s + NHW]

    # ---- conv1: single fused (P, KH*KW*Cin) @ (KH*KW*Cin, NHW) matmul + ReLU ----
    out1 = jnp.maximum(
        jnp.dot(w1_ref[...], im2col_ref[...],
                preferred_element_type=jnp.float32),
        0.0)                                                # (P, NHW)

    # ---- conv1 output into pre-allocated padded scratch (no concatenate) ----
    out1_pad_ref[:, NHW:NHW + lane_pad] = jnp.zeros((P, lane_pad), jnp.float32)
    out1_pad_ref[:, :NHW] = out1
    out1_pad = out1_pad_ref[...]                            # (P, NHW + pad)

    # ---- im2col pack for conv2 (reuse the same scratch) ----
    for kh in range(KH):
        for kw in range(KW):
            t = kh * KW + kw
            s = kh * row_stride + kw
            im2col_ref[t * P:(t + 1) * P, :] = out1_pad[:, s:s + NHW]

    # ---- conv2: single fused matmul ----
    acc2 = jnp.dot(w2_ref[...], im2col_ref[...],
                   preferred_element_type=jnp.float32)      # (P, NHW)

    # ---- residual: center_pad_tensor_like(x, out2) == central crop of x ----
    # Crop offset of (KH-1, KW-1) rows/cols == lane shift of (KH-1)*W + (KW-1).
    off = (KH - 1) * row_stride + (KW - 1)
    residual = x[:, off:off + NHW]

    # ---- add + ReLU, full-width lane-dense store ----
    o_ref[...] = jnp.maximum(acc2 + residual, 0.0).astype(o_ref.dtype)


def basic_block_forward(x_nchw, w1_oihw, w2_oihw):
    """x_nchw: (N, Cin, H, W); weights in PyTorch OIHW layout, bias-free."""
    N, Cin, H, W = x_nchw.shape
    P, Cin_w, KH, KW = w1_oihw.shape
    assert Cin_w == Cin
    # TODO(synk): stride > 1 and a user-supplied `downsample` module are not
    # implemented; this covers the default BasicBlock(inplanes=planes, stride=1).
    assert Cin == P, "residual add without downsample requires inplanes == planes"

    H1, W1 = H - (KH - 1), W - (KW - 1)
    H2, W2 = H1 - (KH - 1), W1 - (KW - 1)
    assert H2 > 0 and W2 > 0, "input too small for two valid 5x5 convs"
    NHW = N * H * W

    # Lane pad must cover the largest tap/residual shift, 128-aligned.
    shift_max = (KH - 1) * W + (KW - 1)
    LANE_PAD = max(128, pl.cdiv(shift_max, 128) * 128)
    assert LANE_PAD >= shift_max

    # Lane-dense activation layout: (Cin, N*H*W), zero-padded on the lane axis
    # so every tap's shifted view stays in bounds.
    x_cnhw = jnp.transpose(x_nchw, (1, 0, 2, 3)).reshape(Cin, NHW)
    x_pad = jnp.concatenate(
        [x_cnhw, jnp.zeros((Cin, LANE_PAD), x_cnhw.dtype)], axis=1)

    # Weight slabs matching im2col row order: column index = (kh*KW + kw)*Cin + c.
    w1_flat = jnp.transpose(w1_oihw, (0, 2, 3, 1)).reshape(P, KH * KW * Cin)
    w2_flat = jnp.transpose(w2_oihw, (0, 2, 3, 1)).reshape(P, KH * KW * P)

    kernel = functools.partial(
        basic_block_kernel, row_stride=W, KH=KH, KW=KW, NHW=NHW)

    # FLOPs actually executed: both convs run over the full NHW grid.
    flops = 2 * NHW * KH * KW * Cin * P + 2 * NHW * KH * KW * P * P
    itemsize = jnp.dtype(x_nchw.dtype).itemsize
    bytes_accessed = (x_pad.size + w1_flat.size + w2_flat.size + P * NHW) * itemsize

    out_flat = pl.pallas_call(
        kernel,
        out_shape=jax.ShapeDtypeStruct((P, NHW), x_nchw.dtype),
        grid=(1,),
        in_specs=[
            pl.BlockSpec((Cin, NHW + LANE_PAD), lambda i: (0, 0)),
            pl.BlockSpec((P, KH * KW * Cin), lambda i: (0, 0)),
            pl.BlockSpec((P, KH * KW * P), lambda i: (0, 0)),
        ],
        out_specs=pl.BlockSpec((P, NHW), lambda i: (0, 0)),
        scratch_shapes=[
            pltpu.VMEM((KH * KW * Cin, NHW), jnp.float32),   # im2col slab
            pltpu.VMEM((P, NHW + LANE_PAD), jnp.float32),    # padded conv1 out
        ],
        compiler_params=pltpu.CompilerParams(
            dimension_semantics=("arbitrary",)),
        cost_estimate=pl.CostEstimate(
            flops=flops, transcendentals=0, bytes_accessed=bytes_accessed),
    )(x_pad, w1_flat, w2_flat)

    # Crop the valid region and return to NCHW (pure layout plumbing).
    out_full = out_flat.reshape(P, N, H, W)
    out = out_full[:, :, :H2, :W2]
    return jnp.transpose(out, (1, 0, 2, 3))  # (N, P, H2, W2)


def basic_block_reference(x_nchw, w1_oihw, w2_oihw):
    """Pure-JAX reference (lax.conv) for correctness checking."""
    dn = ("NCHW", "OIHW", "NCHW")
    out = jax.lax.conv_general_dilated(
        x_nchw, w1_oihw, (1, 1), "VALID", dimension_numbers=dn)
    out = jnp.maximum(out, 0.0)
    out = jax.lax.conv_general_dilated(
        out, w2_oihw, (1, 1), "VALID", dimension_numbers=dn)
    residual = x_nchw[:, :, 4:-4, 4:-4]  # central crop by 4 on each side
    return jnp.maximum(out + residual, 0.0)


if __name__ == "__main__":
    N, C, H, W = 2, 4, 16, 16   # inplanes == planes == 4 (needed when downsample=None)
    planes, K = 4, 5

    key = jax.random.PRNGKey(0)
    kx, k1, k2 = jax.random.split(key, 3)
    x = jax.random.normal(kx, (N, C, H, W), dtype=jnp.float32)
    w1 = 0.1 * jax.random.normal(k1, (planes, C, K, K), dtype=jnp.float32)
    w2 = 0.1 * jax.random.normal(k2, (planes, planes, K, K), dtype=jnp.float32)

    out = basic_block_forward(x, w1, w2)
    out = jax.block_until_ready(out)

    ref = basic_block_reference(x, w1, w2)
    assert out.shape == (N, planes, H - 8, W - 8), out.shape
    assert jnp.allclose(out, ref, atol=1e-4, rtol=1e-4), "mismatch vs reference"

    print("KERNEL_OK")
</pallas_src>

<mosaic_0001>
module attributes {stable_mosaic.version = 11 : i64} {
  func.func @basic_block_kernel(%arg0: i32, %arg1: memref<4x640xf32, #tpu.memory_space<vmem>>, %arg2: memref<4x100xf32, #tpu.memory_space<vmem>>, %arg3: memref<4x100xf32, #tpu.memory_space<vmem>>, %arg4: memref<4x512xf32, #tpu.memory_space<vmem>>, %arg5: memref<100x512xf32, #tpu.memory_space<vmem>>, %arg6: memref<4x640xf32, #tpu.memory_space<vmem>>) attributes {dimension_semantics = [#tpu.dimension_semantics<arbitrary>], iteration_bounds = array<i64: 1>, scalar_prefetch = 0 : i64, scratch_operands = 2 : i64, tpu.core_type = #tpu.core_type<tc>, window_params = [{pipeline_mode = #tpu.pipeline_mode<synchronous>, transform_indices = @transform_0, window_bounds = array<i64: 4, 640>}, {pipeline_mode = #tpu.pipeline_mode<synchronous>, transform_indices = @transform_1, window_bounds = array<i64: 4, 100>}, {pipeline_mode = #tpu.pipeline_mode<synchronous>, transform_indices = @transform_2, window_bounds = array<i64: 4, 100>}, {pipeline_mode = #tpu.pipeline_mode<synchronous>, transform_indices = @transform_3, window_bounds = array<i64: 4, 512>}]} {
    %c0 = arith.constant 0 : index
    %c0_0 = arith.constant 0 : index
    %0 = vector.load %arg1[%c0, %c0_0] : memref<4x640xf32, #tpu.memory_space<vmem>>, vector<4x640xf32>
    %1 = vector.extract_strided_slice %0 {offsets = [0, 0], sizes = [4, 512], strides = [1, 1]} : vector<4x640xf32> to vector<4x512xf32>
    %c0_1 = arith.constant 0 : index
    %c0_2 = arith.constant 0 : index
    %2 = vector.load %arg5[%c0_1, %c0_2] : memref<100x512xf32, #tpu.memory_space<vmem>>, vector<4x512xf32>
    tpu.vector_store %arg5[%c0_1, %c0_2], %1 {strides = array<i32>} : memref<100x512xf32, #tpu.memory_space<vmem>>, vector<4x512xf32>,
    %3 = vector.extract_strided_slice %0 {offsets = [0, 1], sizes = [4, 512], strides = [1, 1]} : vector<4x640xf32> to vector<4x512xf32>
    %c4 = arith.constant 4 : index
    %c0_3 = arith.constant 0 : index
    %4 = vector.load %arg5[%c4, %c0_3] : memref<100x512xf32, #tpu.memory_space<vmem>>, vector<4x512xf32>
    tpu.vector_store %arg5[%c4, %c0_3], %3 {strides = array<i32>} : memref<100x512xf32, #tpu.memory_space<vmem>>, vector<4x512xf32>,
    %5 = vector.extract_strided_slice %0 {offsets = [0, 2], sizes = [4, 512], strides = [1, 1]} : vector<4x640xf32> to vector<4x512xf32>
    %c8 = arith.constant 8 : index
    %c0_4 = arith.constant 0 : index
    %6 = vector.load %arg5[%c8, %c0_4] : memref<100x512xf32, #tpu.memory_space<vmem>>, vector<4x512xf32>
    tpu.vector_store %arg5[%c8, %c0_4], %5 {strides = array<i32>} : memref<100x512xf32, #tpu.memory_space<vmem>>, vector<4x512xf32>,
    %7 = vector.extract_strided_slice %0 {offsets = [0, 3], sizes = [4, 512], strides = [1, 1]} : vector<4x640xf32> to vector<4x512xf32>
    %c12 = arith.constant 12 : index
    %c0_5 = arith.constant 0 : index
    %8 = vector.load %arg5[%c12, %c0_5] : memref<100x512xf32, #tpu.memory_space<vmem>>, vector<4x512xf32>
    tpu.vector_store %arg5[%c12, %c0_5], %7 {strides = array<i32>} : memref<100x512xf32, #tpu.memory_space<vmem>>, vector<4x512xf32>,
    %9 = vector.extract_strided_slice %0 {offsets = [0, 4], sizes = [4, 512], strides = [1, 1]} : vector<4x640xf32> to vector<4x512xf32>
    %c16 = arith.constant 16 : index
    %c0_6 = arith.constant 0 : index
    %10 = vector.load %arg5[%c16, %c0_6] : memref<100x512xf32, #tpu.memory_space<vmem>>, vector<4x512xf32>
    tpu.vector_store %arg5[%c16, %c0_6], %9 {strides = array<i32>} : memref<100x512xf32, #tpu.memory_space<vmem>>, vector<4x512xf32>,
    %11 = vector.extract_strided_slice %0 {offsets = [0, 16], sizes = [4, 512], strides = [1, 1]} : vector<4x640xf32> to vector<4x512xf32>
    %c20 = arith.constant 20 : index
    %c0_7 = arith.constant 0 : index
    %12 = vector.load %arg5[%c20, %c0_7] : memref<100x512xf32, #tpu.memory_space<vmem>>, vector<4x512xf32>
    tpu.vector_store %arg5[%c20, %c0_7], %11 {strides = array<i32>} : memref<100x512xf32, #tpu.memory_space<vmem>>, vector<4x512xf32>,
    %13 = vector.extract_strided_slice %0 {offsets = [0, 17], sizes = [4, 512], strides = [1, 1]} : vector<4x640xf32> to vector<4x512xf32>
    %c24 = arith.constant 24 : index
    %c0_8 = arith.constant 0 : index
    %14 = vector.load %arg5[%c24, %c0_8] : memref<100x512xf32, #tpu.memory_space<vmem>>, vector<4x512xf32>
    tpu.vector_store %arg5[%c24, %c0_8], %13 {strides = array<i32>} : memref<100x512xf32, #tpu.memory_space<vmem>>, vector<4x512xf32>,
    %15 = vector.extract_strided_slice %0 {offsets = [0, 18], sizes = [4, 512], strides = [1, 1]} : vector<4x640xf32> to vector<4x512xf32>
    %c28 = arith.constant 28 : index
    %c0_9 = arith.constant 0 : index
    %16 = vector.load %arg5[%c28, %c0_9] : memref<100x512xf32, #tpu.memory_space<vmem>>, vector<4x512xf32>
    tpu.vector_store %arg5[%c28, %c0_9], %15 {strides = array<i32>} : memref<100x512xf32, #tpu.memory_space<vmem>>, vector<4x512xf32>,
    %17 = vector.extract_strided_slice %0 {offsets = [0, 19], sizes = [4, 512], strides = [1, 1]} : vector<4x640xf32> to vector<4x512xf32>
    %c32 = arith.constant 32 : index
    %c0_10 = arith.constant 0 : index
    %18 = vector.load %arg5[%c32, %c0_10] : memref<100x512xf32, #tpu.memory_space<vmem>>, vector<4x512xf32>
    tpu.vector_store %arg5[%c32, %c0_10], %17 {strides = array<i32>} : memref<100x512xf32, #tpu.memory_space<vmem>>, vector<4x512xf32>,
    %19 = vector.extract_strided_slice %0 {offsets = [0, 20], sizes = [4, 512], strides = [1, 1]} : vector<4x640xf32> to vector<4x512xf32>
    %c36 = arith.constant 36 : index
    %c0_11 = arith.constant 0 : index
    %20 = vector.load %arg5[%c36, %c0_11] : memref<100x512xf32, #tpu.memory_space<vmem>>, vector<4x512xf32>
    tpu.vector_store %arg5[%c36, %c0_11], %19 {strides = array<i32>} : memref<100x512xf32, #tpu.memory_space<vmem>>, vector<4x512xf32>,
    %21 = vector.extract_strided_slice %0 {offsets = [0, 32], sizes = [4, 512], strides = [1, 1]} : vector<4x640xf32> to vector<4x512xf32>
    %c40 = arith.constant 40 : index
    %c0_12 = arith.constant 0 : index
    %22 = vector.load %arg5[%c40, %c0_12] : memref<100x512xf32, #tpu.memory_space<vmem>>, vector<4x512xf32>
    tpu.vector_store %arg5[%c40, %c0_12], %21 {strides = array<i32>} : memref<100x512xf32, #tpu.memory_space<vmem>>, vector<4x512xf32>,
    %23 = vector.extract_strided_slice %0 {offsets = [0, 33], sizes = [4, 512], strides = [1, 1]} : vector<4x640xf32> to vector<4x512xf32>
    %c44 = arith.constant 44 : index
    %c0_13 = arith.constant 0 : index
    %24 = vector.load %arg5[%c44, %c0_13] : memref<100x512xf32, #tpu.memory_space<vmem>>, vector<4x512xf32>
    tpu.vector_store %arg5[%c44, %c0_13], %23 {strides = array<i32>} : memref<100x512xf32, #tpu.memory_space<vmem>>, vector<4x512xf32>,
    %25 = vector.extract_strided_slice %0 {offsets = [0, 34], sizes = [4, 512], strides = [1, 1]} : vector<4x640xf32> to vector<4x512xf32>
    %c48 = arith.constant 48 : index
    %c0_14 = arith.constant 0 : index
    %26 = vector.load %arg5[%c48, %c0_14] : memref<100x512xf32, #tpu.memory_space<vmem>>, vector<4x512xf32>
    tpu.vector_store %arg5[%c48, %c0_14], %25 {strides = array<i32>} : memref<100x512xf32, #tpu.memory_space<vmem>>, vector<4x512xf32>,
    %27 = vector.extract_strided_slice %0 {offsets = [0, 35], sizes = [4, 512], strides = [1, 1]} : vector<4x640xf32> to vector<4x512xf32>
    %c52 = arith.constant 52 : index
    %c0_15 = arith.constant 0 : index
    %28 = vector.load %arg5[%c52, %c0_15] : memref<100x512xf32, #tpu.memory_space<vmem>>, vector<4x512xf32>
    tpu.vector_store %arg5[%c52, %c0_15], %27 {strides = array<i32>} : memref<100x512xf32, #tpu.memory_space<vmem>>, vector<4x512xf32>,
    %29 = vector.extract_strided_slice %0 {offsets = [0, 36], sizes = [4, 512], strides = [1, 1]} : vector<4x640xf32> to vector<4x512xf32>
    %c56 = arith.constant 56 : index
    %c0_16 = arith.constant 0 : index
    %30 = vector.load %arg5[%c56, %c0_16] : memref<100x512xf32, #tpu.memory_space<vmem>>, vector<4x512xf32>
    tpu.vector_store %arg5[%c56, %c0_16], %29 {strides = array<i32>} : memref<100x512xf32, #tpu.memory_space<vmem>>, vector<4x512xf32>,
    %31 = vector.extract_strided_slice %0 {offsets = [0, 48], sizes = [4, 512], strides = [1, 1]} : vector<4x640xf32> to vector<4x512xf32>
    %c60 = arith.constant 60 : index
    %c0_17 = arith.constant 0 : index
    %32 = vector.load %arg5[%c60, %c0_17] : memref<100x512xf32, #tpu.memory_space<vmem>>, vector<4x512xf32>
    tpu.vector_store %arg5[%c60, %c0_17], %31 {strides = array<i32>} : memref<100x512xf32, #tpu.memory_space<vmem>>, vector<4x512xf32>,
    %33 = vector.extract_strided_slice %0 {offsets = [0, 49], sizes = [4, 512], strides = [1, 1]} : vector<4x640xf32> to vector<4x512xf32>
    %c64 = arith.constant 64 : index
    %c0_18 = arith.constant 0 : index
    %34 = vector.load %arg5[%c64, %c0_18] : memref<100x512xf32, #tpu.memory_space<vmem>>, vector<4x512xf32>
    tpu.vector_store %arg5[%c64, %c0_18], %33 {strides = array<i32>} : memref<100x512xf32, #tpu.memory_space<vmem>>, vector<4x512xf32>,
    %35 = vector.extract_strided_slice %0 {offsets = [0, 50], sizes = [4, 512], strides = [1, 1]} : vector<4x640xf32> to vector<4x512xf32>
    %c68 = arith.constant 68 : index
    %c0_19 = arith.constant 0 : index
    %36 = vector.load %arg5[%c68, %c0_19] : memref<100x512xf32, #tpu.memory_space<vmem>>, vector<4x512xf32>
    tpu.vector_store %arg5[%c68, %c0_19], %35 {strides = array<i32>} : memref<100x512xf32, #tpu.memory_space<vmem>>, vector<4x512xf32>,
    %37 = vector.extract_strided_slice %0 {offsets = [0, 51], sizes = [4, 512], strides = [1, 1]} : vector<4x640xf32> to vector<4x512xf32>
    %c72 = arith.constant 72 : index
    %c0_20 = arith.constant 0 : index
    %38 = vector.load %arg5[%c72, %c0_20] : memref<100x512xf32, #tpu.memory_space<vmem>>, vector<4x512xf32>
    tpu.vector_store %arg5[%c72, %c0_20], %37 {strides = array<i32>} : memref<100x512xf32, #tpu.memory_space<vmem>>, vector<4x512xf32>,
    %39 = vector.extract_strided_slice %0 {offsets = [0, 52], sizes = [4, 512], strides = [1, 1]} : vector<4x640xf32> to vector<4x512xf32>
    %c76 = arith.constant 76 : index
    %c0_21 = arith.constant 0 : index
    %40 = vector.load %arg5[%c76, %c0_21] : memref<100x512xf32, #tpu.memory_space<vmem>>, vector<4x512xf32>
    tpu.vector_store %arg5[%c76, %c0_21], %39 {strides = array<i32>} : memref<100x512xf32, #tpu.memory_space<vmem>>, vector<4x512xf32>,
    %41 = vector.extract_strided_slice %0 {offsets = [0, 64], sizes = [4, 512], strides = [1, 1]} : vector<4x640xf32> to vector<4x512xf32>
    %c80 = arith.constant 80 : index
    %c0_22 = arith.constant 0 : index
    %42 = vector.load %arg5[%c80, %c0_22] : memref<100x512xf32, #tpu.memory_space<vmem>>, vector<4x512xf32>
    tpu.vector_store %arg5[%c80, %c0_22], %41 {strides = array<i32>} : memref<100x512xf32, #tpu.memory_space<vmem>>, vector<4x512xf32>,
    %43 = vector.extract_strided_slice %0 {offsets = [0, 65], sizes = [4, 512], strides = [1, 1]} : vector<4x640xf32> to vector<4x512xf32>
    %c84 = arith.constant 84 : index
    %c0_23 = arith.constant 0 : index
    %44 = vector.load %arg5[%c84, %c0_23] : memref<100x512xf32, #tpu.memory_space<vmem>>, vector<4x512xf32>
    tpu.vector_store %arg5[%c84, %c0_23], %43 {strides = array<i32>} : memref<100x512xf32, #tpu.memory_space<vmem>>, vector<4x512xf32>,
    %45 = vector.extract_strided_slice %0 {offsets = [0, 66], sizes = [4, 512], strides = [1, 1]} : vector<4x640xf32> to vector<4x512xf32>
    %c88 = arith.constant 88 : index
    %c0_24 = arith.constant 0 : index
    %46 = vector.load %arg5[%c88, %c0_24] : memref<100x512xf32, #tpu.memory_space<vmem>>, vector<4x512xf32>
    tpu.vector_store %arg5[%c88, %c0_24], %45 {strides = array<i32>} : memref<100x512xf32, #tpu.memory_space<vmem>>, vector<4x512xf32>,
    %47 = vector.extract_strided_slice %0 {offsets = [0, 67], sizes = [4, 512], strides = [1, 1]} : vector<4x640xf32> to vector<4x512xf32>
    %c92 = arith.constant 92 : index
    %c0_25 = arith.constant 0 : index
    %48 = vector.load %arg5[%c92, %c0_25] : memref<100x512xf32, #tpu.memory_space<vmem>>, vector<4x512xf32>
    tpu.vector_store %arg5[%c92, %c0_25], %47 {strides = array<i32>} : memref<100x512xf32, #tpu.memory_space<vmem>>, vector<4x512xf32>,
    %49 = vector.extract_strided_slice %0 {offsets = [0, 68], sizes = [4, 512], strides = [1, 1]} : vector<4x640xf32> to vector<4x512xf32>
    %c96 = arith.constant 96 : index
    %c0_26 = arith.constant 0 : index
    %50 = vector.load %arg5[%c96, %c0_26] : memref<100x512xf32, #tpu.memory_space<vmem>>, vector<4x512xf32>
    tpu.vector_store %arg5[%c96, %c0_26], %49 {strides = array<i32>} : memref<100x512xf32, #tpu.memory_space<vmem>>, vector<4x512xf32>,
    %c0_27 = arith.constant 0 : index
    %c0_28 = arith.constant 0 : index
    %51 = vector.load %arg2[%c0_27, %c0_28] : memref<4x100xf32, #tpu.memory_space<vmem>>, vector<4x100xf32>
    %c0_29 = arith.constant 0 : index
    %c0_30 = arith.constant 0 : index
    %52 = vector.load %arg5[%c0_29, %c0_30] : memref<100x512xf32, #tpu.memory_space<vmem>>, vector<100x512xf32>
    %cst = arith.constant dense<0.000000e+00> : vector<4x512xf32>
    %53 = tpu.matmul %51, %52, %cst {dimension_numbers = #tpu.dot_dimension_numbers<[1], [0], [0], [1], [0, 0, 1, 1], [], []>} : vector<4x100xf32>, vector<100x512xf32>, vector<4x512xf32> -> vector<4x512xf32>
    %cst_31 = arith.constant 0.000000e+00 : f32
    %54 = vector.broadcast %cst_31 : f32 to vector<4x512xf32>
    %55 = arith.maximumf %53, %54 : vector<4x512xf32>
    %cst_32 = arith.constant 0.000000e+00 : f32
    %56 = vector.broadcast %cst_32 : f32 to vector<4x128xf32>
    %c0_33 = arith.constant 0 : index
    %c512 = arith.constant 512 : index
    %57 = vector.load %arg6[%c0_33, %c512] : memref<4x640xf32, #tpu.memory_space<vmem>>, vector<4x128xf32>
    tpu.vector_store %arg6[%c0_33, %c512], %56 {strides = array<i32>} : memref<4x640xf32, #tpu.memory_space<vmem>>, vector<4x128xf32>,
    %c0_34 = arith.constant 0 : index
    %c0_35 = arith.constant 0 : index
    %58 = vector.load %arg6[%c0_34, %c0_35] : memref<4x640xf32, #tpu.memory_space<vmem>>, vector<4x512xf32>
    tpu.vector_store %arg6[%c0_34, %c0_35], %55 {strides = array<i32>} : memref<4x640xf32, #tpu.memory_space<vmem>>, vector<4x512xf32>,
    %c0_36 = arith.constant 0 : index
    %c0_37 = arith.constant 0 : index
    %59 = vector.load %arg6[%c0_36, %c0_37] : memref<4x640xf32, #tpu.memory_space<vmem>>, vector<4x640xf32>
    %60 = vector.extract_strided_slice %59 {offsets = [0, 0], sizes = [4, 512], strides = [1, 1]} : vector<4x640xf32> to vector<4x512xf32>
    %c0_38 = arith.constant 0 : index
    %c0_39 = arith.constant 0 : index
    %61 = vector.load %arg5[%c0_38, %c0_39] : memref<100x512xf32, #tpu.memory_space<vmem>>, vector<4x512xf32>
    tpu.vector_store %arg5[%c0_38, %c0_39], %60 {strides = array<i32>} : memref<100x512xf32, #tpu.memory_space<vmem>>, vector<4x512xf32>,
    %62 = vector.extract_strided_slice %59 {offsets = [0, 1], sizes = [4, 512], strides = [1, 1]} : vector<4x640xf32> to vector<4x512xf32>
    %c4_40 = arith.constant 4 : index
    %c0_41 = arith.constant 0 : index
    %63 = vector.load %arg5[%c4_40, %c0_41] : memref<100x512xf32, #tpu.memory_space<vmem>>, vector<4x512xf32>
    tpu.vector_store %arg5[%c4_40, %c0_41], %62 {strides = array<i32>} : memref<100x512xf32, #tpu.memory_space<vmem>>, vector<4x512xf32>,
    %64 = vector.extract_strided_slice %59 {offsets = [0, 2], sizes = [4, 512], strides = [1, 1]} : vector<4x640xf32> to vector<4x512xf32>
    %c8_42 = arith.constant 8 : index
    %c0_43 = arith.constant 0 : index
    %65 = vector.load %arg5[%c8_42, %c0_43] : memref<100x512xf32, #tpu.memory_space<vmem>>, vector<4x512xf32>
    tpu.vector_store %arg5[%c8_42, %c0_43], %64 {strides = array<i32>} : memref<100x512xf32, #tpu.memory_space<vmem>>, vector<4x512xf32>,
    %66 = vector.extract_strided_slice %59 {offsets = [0, 3], sizes = [4, 512], strides = [1, 1]} : vector<4x640xf32> to vector<4x512xf32>
    %c12_44 = arith.constant 12 : index
    %c0_45 = arith.constant 0 : index
    %67 = vector.load %arg5[%c12_44, %c0_45] : memref<100x512xf32, #tpu.memory_space<vmem>>, vector<4x512xf32>
    tpu.vector_store %arg5[%c12_44, %c0_45], %66 {strides = array<i32>} : memref<100x512xf32, #tpu.memory_space<vmem>>, vector<4x512xf32>,
    %68 = vector.extract_strided_slice %59 {offsets = [0, 4], sizes = [4, 512], strides = [1, 1]} : vector<4x640xf32> to vector<4x512xf32>
    %c16_46 = arith.constant 16 : index
    %c0_47 = arith.constant 0 : index
    %69 = vector.load %arg5[%c16_46, %c0_47] : memref<100x512xf32, #tpu.memory_space<vmem>>, vector<4x512xf32>
    tpu.vector_store %arg5[%c16_46, %c0_47], %68 {strides = array<i32>} : memref<100x512xf32, #tpu.memory_space<vmem>>, vector<4x512xf32>,
    %70 = vector.extract_strided_slice %59 {offsets = [0, 16], sizes = [4, 512], strides = [1, 1]} : vector<4x640xf32> to vector<4x512xf32>
    %c20_48 = arith.constant 20 : index
    %c0_49 = arith.constant 0 : index
    %71 = vector.load %arg5[%c20_48, %c0_49] : memref<100x512xf32, #tpu.memory_space<vmem>>, vector<4x512xf32>
    tpu.vector_store %arg5[%c20_48, %c0_49], %70 {strides = array<i32>} : memref<100x512xf32, #tpu.memory_space<vmem>>, vector<4x512xf32>,
    %72 = vector.extract_strided_slice %59 {offsets = [0, 17], sizes = [4, 512], strides = [1, 1]} : vector<4x640xf32> to vector<4x512xf32>
    %c24_50 = arith.constant 24 : index
    %c0_51 = arith.constant 0 : index
    %73 = vector.load %arg5[%c24_50, %c0_51] : memref<100x512xf32, #tpu.memory_space<vmem>>, vector<4x512xf32>
    tpu.vector_store %arg5[%c24_50, %c0_51], %72 {strides = array<i32>} : memref<100x512xf32, #tpu.memory_space<vmem>>, vector<4x512xf32>,
    %74 = vector.extract_strided_slice %59 {offsets = [0, 18], sizes = [4, 512], strides = [1, 1]} : vector<4x640xf32> to vector<4x512xf32>
    %c28_52 = arith.constant 28 : index
    %c0_53 = arith.constant 0 : index
    %75 = vector.load %arg5[%c28_52, %c0_53] : memref<100x512xf32, #tpu.memory_space<vmem>>, vector<4x512xf32>
    tpu.vector_store %arg5[%c28_52, %c0_53], %74 {strides = array<i32>} : memref<100x512xf32, #tpu.memory_space<vmem>>, vector<4x512xf32>,
    %76 = vector.extract_strided_slice %59 {offsets = [0, 19], sizes = [4, 512], strides = [1, 1]} : vector<4x640xf32> to vector<4x512xf32>
    %c32_54 = arith.constant 32 : index
    %c0_55 = arith.constant 0 : index
    %77 = vector.load %arg5[%c32_54, %c0_55] : memref<100x512xf32, #tpu.memory_space<vmem>>, vector<4x512xf32>
    tpu.vector_store %arg5[%c32_54, %c0_55], %76 {strides = array<i32>} : memref<100x512xf32, #tpu.memory_space<vmem>>, vector<4x512xf32>,
    %78 = vector.extract_strided_slice %59 {offsets = [0, 20], sizes = [4, 512], strides = [1, 1]} : vector<4x640xf32> to vector<4x512xf32>
    %c36_56 = arith.constant 36 : index
    %c0_57 = arith.constant 0 : index
    %79 = vector.load %arg5[%c36_56, %c0_57] : memref<100x512xf32, #tpu.memory_space<vmem>>, vector<4x512xf32>
    tpu.vector_store %arg5[%c36_56, %c0_57], %78 {strides = array<i32>} : memref<100x512xf32, #tpu.memory_space<vmem>>, vector<4x512xf32>,
    %80 = vector.extract_strided_slice %59 {offsets = [0, 32], sizes = [4, 512], strides = [1, 1]} : vector<4x640xf32> to vector<4x512xf32>
    %c40_58 = arith.constant 40 : index
    %c0_59 = arith.constant 0 : index
    %81 = vector.load %arg5[%c40_58, %c0_59] : memref<100x512xf32, #tpu.memory_space<vmem>>, vector<4x512xf32>
    tpu.vector_store %arg5[%c40_58, %c0_59], %80 {strides = array<i32>} : memref<100x512xf32, #tpu.memory_space<vmem>>, vector<4x512xf32>,
    %82 = vector.extract_strided_slice %59 {offsets = [0, 33], sizes = [4, 512], strides = [1, 1]} : vector<4x640xf32> to vector<4x512xf32>
    %c44_60 = arith.constant 44 : index
    %c0_61 = arith.constant 0 : index
    %83 = vector.load %arg5[%c44_60, %c0_61] : memref<100x512xf32, #tpu.memory_space<vmem>>, vector<4x512xf32>
    tpu.vector_store %arg5[%c44_60, %c0_61], %82 {strides = array<i32>} : memref<100x512xf32, #tpu.memory_space<vmem>>, vector<4x512xf32>,
    %84 = vector.extract_strided_slice %59 {offsets = [0, 34], sizes = [4, 512], strides = [1, 1]} : vector<4x640xf32> to vector<4x512xf32>
    %c48_62 = arith.constant 48 : index
    %c0_63 = arith.constant 0 : index
    %85 = vector.load %arg5[%c48_62, %c0_63] : memref<100x512xf32, #tpu.memory_space<vmem>>, vector<4x512xf32>
    tpu.vector_store %arg5[%c48_62, %c0_63], %84 {strides = array<i32>} : memref<100x512xf32, #tpu.memory_space<vmem>>, vector<4x512xf32>,
    %86 = vector.extract_strided_slice %59 {offsets = [0, 35], sizes = [4, 512], strides = [1, 1]} : vector<4x640xf32> to vector<4x512xf32>
    %c52_64 = arith.constant 52 : index
    %c0_65 = arith.constant 0 : index
    %87 = vector.load %arg5[%c52_64, %c0_65] : memref<100x512xf32, #tpu.memory_space<vmem>>, vector<4x512xf32>
    tpu.vector_store %arg5[%c52_64, %c0_65], %86 {strides = array<i32>} : memref<100x512xf32, #tpu.memory_space<vmem>>, vector<4x512xf32>,
    %88 = vector.extract_strided_slice %59 {offsets = [0, 36], sizes = [4, 512], strides = [1, 1]} : vector<4x640xf32> to vector<4x512xf32>
    %c56_66 = arith.constant 56 : index
    %c0_67 = arith.constant 0 : index
    %89 = vector.load %arg5[%c56_66, %c0_67] : memref<100x512xf32, #tpu.memory_space<vmem>>, vector<4x512xf32>
    tpu.vector_store %arg5[%c56_66, %c0_67], %88 {strides = array<i32>} : memref<100x512xf32, #tpu.memory_space<vmem>>, vector<4x512xf32>,
    %90 = vector.extract_strided_slice %59 {offsets = [0, 48], sizes = [4, 512], strides = [1, 1]} : vector<4x640xf32> to vector<4x512xf32>
    %c60_68 = arith.constant 60 : index
    %c0_69 = arith.constant 0 : index
    %91 = vector.load %arg5[%c60_68, %c0_69] : memref<100x512xf32, #tpu.memory_space<vmem>>, vector<4x512xf32>
    tpu.vector_store %arg5[%c60_68, %c0_69], %90 {strides = array<i32>} : memref<100x512xf32, #tpu.memory_space<vmem>>, vector<4x512xf32>,
    %92 = vector.extract_strided_slice %59 {offsets = [0, 49], sizes = [4, 512], strides = [1, 1]} : vector<4x640xf32> to vector<4x512xf32>
    %c64_70 = arith.constant 64 : index
    %c0_71 = arith.constant 0 : index
    %93 = vector.load %arg5[%c64_70, %c0_71] : memref<100x512xf32, #tpu.memory_space<vmem>>, vector<4x512xf32>
    tpu.vector_store %arg5[%c64_70, %c0_71], %92 {strides = array<i32>} : memref<100x512xf32, #tpu.memory_space<vmem>>, vector<4x512xf32>,
    %94 = vector.extract_strided_slice %59 {offsets = [0, 50], sizes = [4, 512], strides = [1, 1]} : vector<4x640xf32> to vector<4x512xf32>
    %c68_72 = arith.constant 68 : index
    %c0_73 = arith.constant 0 : index
    %95 = vector.load %arg5[%c68_72, %c0_73] : memref<100x512xf32, #tpu.memory_space<vmem>>, vector<4x512xf32>
    tpu.vector_store %arg5[%c68_72, %c0_73], %94 {strides = array<i32>} : memref<100x512xf32, #tpu.memory_space<vmem>>, vector<4x512xf32>,
    %96 = vector.extract_strided_slice %59 {offsets = [0, 51], sizes = [4, 512], strides = [1, 1]} : vector<4x640xf32> to vector<4x512xf32>
    %c72_74 = arith.constant 72 : index
    %c0_75 = arith.constant 0 : index
    %97 = vector.load %arg5[%c72_74, %c0_75] : memref<100x512xf32, #tpu.memory_space<vmem>>, vector<4x512xf32>
    tpu.vector_store %arg5[%c72_74, %c0_75], %96 {strides = array<i32>} : memref<100x512xf32, #tpu.memory_space<vmem>>, vector<4x512xf32>,
    %98 = vector.extract_strided_slice %59 {offsets = [0, 52], sizes = [4, 512], strides = [1, 1]} : vector<4x640xf32> to vector<4x512xf32>
    %c76_76 = arith.constant 76 : index
    %c0_77 = arith.constant 0 : index
    %99 = vector.load %arg5[%c76_76, %c0_77] : memref<100x512xf32, #tpu.memory_space<vmem>>, vector<4x512xf32>
    tpu.vector_store %arg5[%c76_76, %c0_77], %98 {strides = array<i32>} : memref<100x512xf32, #tpu.memory_space<vmem>>, vector<4x512xf32>,
    %100 = vector.extract_strided_slice %59 {offsets = [0, 64], sizes = [4, 512], strides = [1, 1]} : vector<4x640xf32> to vector<4x512xf32>
    %c80_78 = arith.constant 80 : index
    %c0_79 = arith.constant 0 : index
    %101 = vector.load %arg5[%c80_78, %c0_79] : memref<100x512xf32, #tpu.memory_space<vmem>>, vector<4x512xf32>
    tpu.vector_store %arg5[%c80_78, %c0_79], %100 {strides = array<i32>} : memref<100x512xf32, #tpu.memory_space<vmem>>, vector<4x512xf32>,
    %102 = vector.extract_strided_slice %59 {offsets = [0, 65], sizes = [4, 512], strides = [1, 1]} : vector<4x640xf32> to vector<4x512xf32>
    %c84_80 = arith.constant 84 : index
    %c0_81 = arith.constant 0 : index
    %103 = vector.load %arg5[%c84_80, %c0_81] : memref<100x512xf32, #tpu.memory_space<vmem>>, vector<4x512xf32>
    tpu.vector_store %arg5[%c84_80, %c0_81], %102 {strides = array<i32>} : memref<100x512xf32, #tpu.memory_space<vmem>>, vector<4x512xf32>,
    %104 = vector.extract_strided_slice %59 {offsets = [0, 66], sizes = [4, 512], strides = [1, 1]} : vector<4x640xf32> to vector<4x512xf32>
    %c88_82 = arith.constant 88 : index
    %c0_83 = arith.constant 0 : index
    %105 = vector.load %arg5[%c88_82, %c0_83] : memref<100x512xf32, #tpu.memory_space<vmem>>, vector<4x512xf32>
    tpu.vector_store %arg5[%c88_82, %c0_83], %104 {strides = array<i32>} : memref<100x512xf32, #tpu.memory_space<vmem>>, vector<4x512xf32>,
    %106 = vector.extract_strided_slice %59 {offsets = [0, 67], sizes = [4, 512], strides = [1, 1]} : vector<4x640xf32> to vector<4x512xf32>
    %c92_84 = arith.constant 92 : index
    %c0_85 = arith.constant 0 : index
    %107 = vector.load %arg5[%c92_84, %c0_85] : memref<100x512xf32, #tpu.memory_space<vmem>>, vector<4x512xf32>
    tpu.vector_store %arg5[%c92_84, %c0_85], %106 {strides = array<i32>} : memref<100x512xf32, #tpu.memory_space<vmem>>, vector<4x512xf32>,
    %108 = vector.extract_strided_slice %59 {offsets = [0, 68], sizes = [4, 512], strides = [1, 1]} : vector<4x640xf32> to vector<4x512xf32>
    %c96_86 = arith.constant 96 : index
    %c0_87 = arith.constant 0 : index
    %109 = vector.load %arg5[%c96_86, %c0_87] : memref<100x512xf32, #tpu.memory_space<vmem>>, vector<4x512xf32>
    tpu.vector_store %arg5[%c96_86, %c0_87], %108 {strides = array<i32>} : memref<100x512xf32, #tpu.memory_space<vmem>>, vector<4x512xf32>,
    %c0_88 = arith.constant 0 : index
    %c0_89 = arith.constant 0 : index
    %110 = vector.load %arg3[%c0_88, %c0_89] : memref<4x100xf32, #tpu.memory_space<vmem>>, vector<4x100xf32>
    %c0_90 = arith.constant 0 : index
    %c0_91 = arith.constant 0 : index
    %111 = vector.load %arg5[%c0_90, %c0_91] : memref<100x512xf32, #tpu.memory_space<vmem>>, vector<100x512xf32>
    %cst_92 = arith.constant dense<0.000000e+00> : vector<4x512xf32>
    %112 = tpu.matmul %110, %111, %cst_92 {dimension_numbers = #tpu.dot_dimension_numbers<[1], [0], [0], [1], [0, 0, 1, 1], [], []>} : vector<4x100xf32>, vector<100x512xf32>, vector<4x512xf32> -> vector<4x512xf32>
    %113 = vector.extract_strided_slice %0 {offsets = [0, 68], sizes = [4, 512], strides = [1, 1]} : vector<4x640xf32> to vector<4x512xf32>
    %114 = arith.addf %112, %113 : vector<4x512xf32>
    %cst_93 = arith.constant 0.000000e+00 : f32
    %115 = vector.broadcast %cst_93 : f32 to vector<4x512xf32>
    %116 = arith.maximumf %114, %115 : vector<4x512xf32>
    %c0_94 = arith.constant 0 : index
    %c0_95 = arith.constant 0 : index
    %117 = vector.load %arg4[%c0_94, %c0_95] : memref<4x512xf32, #tpu.memory_space<vmem>>, vector<4x512xf32>
    tpu.vector_store %arg4[%c0_94, %c0_95], %116 {strides = array<i32>} : memref<4x512xf32, #tpu.memory_space<vmem>>, vector<4x512xf32>,
    return
  }
  func.func @transform_0(%arg0: i32) -> (i32, i32) {
    %c0_i32 = arith.constant 0 : i32
    %c0_i32_0 = arith.constant 0 : i32
    %c0_i32_1 = arith.constant 0 : i32
    return %c0_i32, %c0_i32_0 : i32, i32
  }
  func.func @transform_1(%arg0: i32) -> (i32, i32) {
    %c0_i32 = arith.constant 0 : i32
    %c0_i32_0 = arith.constant 0 : i32
    %c0_i32_1 = arith.constant 0 : i32
    return %c0_i32, %c0_i32_0 : i32, i32
  }
  func.func @transform_2(%arg0: i32) -> (i32, i32) {
    %c0_i32 = arith.constant 0 : i32
    %c0_i32_0 = arith.constant 0 : i32
    %c0_i32_1 = arith.constant 0 : i32
    return %c0_i32, %c0_i32_0 : i32, i32
  }
  func.func @transform_3(%arg0: i32) -> (i32, i32) {
    %c0_i32 = arith.constant 0 : i32
    %c0_i32_0 = arith.constant 0 : i32
    %c0_i32_1 = arith.constant 0 : i32
    return %c0_i32, %c0_i32_0 : i32, i32
  }
}

</mosaic_0001>

<llo_original>
// kernel: tpu_custom_call.1
$region0: #{tpu_custom_call.1}
  #allocation0 [shape = 'u32[]', space=smem, size = 0x4, offset = 0x4, fixed_abs, tag = 'smem constant byte address 0x4 - core index']
  #allocation1 [shape = 'u32[72,128]{1,0:T(1,128)}', space=vmem, size = 0x9000, scoped, tag = 'internal scratch']
  #allocation2 [shape = 'f32[100,512]{1,0:T(8,128)}', space=vmem, size = 0x34000, scoped, tag = 'scratch operand']
  #allocation3 [shape = 'f32[4,640]{1,0:T(4,128)}', space=vmem, size = 0x2800, scoped, tag = 'scratch operand']
  %s0 = inlined_call_operand.hbm [shape: f32[4,640], index: 0, kind: input, shape index: {}]
  %s1 = inlined_call_operand.hbm [shape: f32[4,100], index: 1, kind: input, shape index: {}]
  %s2 = inlined_call_operand.hbm [shape: f32[4,100], index: 2, kind: input, shape index: {}]
  %s3 = inlined_call_operand.hbm [shape: f32[4,512], index: 3, kind: output, shape index: {}]
  %s4 = sld [smem:[#allocation0]]
  $region34: #{tpu_custom_call.1} parent=0
    _
  %s6 = ssub.s32 1, %s4
  %s7 = scalar_select 0, %s6, %s4
  $region1: #{tpu_custom_call.1} parent=0
    #allocation4 [shape = 'u8[10240]{0}', space=vmem, size = 0x2800, scoped, tag = 'input window, operand 0, single buffered']
    #allocation5 [shape = 's32[1]{0}', space=sflag, size = 0x4, scoped, tag = 'scoped memory for tpu_custom_call.1']
    #allocation6 [shape = 's32[1]{0}', space=sflag, size = 0x4, scoped, tag = 'scoped memory for tpu_custom_call.1']
    #allocation7 [shape = 'u8[2048]{0}', space=vmem, size = 0x800, scoped, tag = 'input window, operand 1, single buffered']
    #allocation8 [shape = 's32[1]{0}', space=sflag, size = 0x4, scoped, tag = 'scoped memory for tpu_custom_call.1']
    #allocation9 [shape = 'u8[2048]{0}', space=vmem, size = 0x800, scoped, tag = 'input window, operand 2, single buffered']
    #allocation10 [shape = 'u8[8192]{0}', space=vmem, size = 0x2000, scoped, tag = 'output window, operand 0, single buffered']
    %8 = vsyncpa [#allocation5], 0
    %9 = vsyncpa [#allocation8], 0
    %10 = vsyncpa [#allocation6], 0
    // Predicated region
    $region2: #{tpu_custom_call.1} parent=1 // pred_check
      _
    $region3: #{tpu_custom_call.1} parent=1 // pred_check_branch
      %12 = sbr.rel (0) target = $region5
    $region4: #{tpu_custom_call.1} parent=1 // pred_region
      %14 = vsyncadd [#allocation5], 0
      %s16 = sshll.u32 %s0, 4
      %s17 = int_to_ptr.hbm [resolvable:$true] %s16
      %s18 = sshll.u32 [#allocation4], 4
      %s19 = int_to_ptr.vmem [resolvable:$true] %s18
      %21 = dma.hbm_to_vmem [thread:$0]  %s17, 320, %s19, [#allocation5]
    $region5: #{tpu_custom_call.1} parent=1 // pred_fallthru
      _
    // Predicated region
    $region6: #{tpu_custom_call.1} parent=1 // pred_check
      _
    $region7: #{tpu_custom_call.1} parent=1 // pred_check_branch
      %23 = sbr.rel (0) target = $region9
    $region8: #{tpu_custom_call.1} parent=1 // pred_region
      %25 = vsyncadd [#allocation8], 0
      %s27 = sshll.u32 %s1, 4
      %s28 = int_to_ptr.hbm [resolvable:$true] %s27
      %s29 = sshll.u32 [#allocation7], 4
      %s30 = int_to_ptr.vmem [resolvable:$true] %s29
      %32 = dma.hbm_to_vmem [thread:$0]  %s28, 64, %s30, [#allocation8]
    $region9: #{tpu_custom_call.1} parent=1 // pred_fallthru
      _
    // Predicated region
    $region10: #{tpu_custom_call.1} parent=1 // pred_check
      _
    $region11: #{tpu_custom_call.1} parent=1 // pred_check_branch
      %34 = sbr.rel (0) target = $region13
    $region12: #{tpu_custom_call.1} parent=1 // pred_region
      %36 = vsyncadd [#allocation8], 0
      %s38 = sshll.u32 %s2, 4
      %s39 = int_to_ptr.hbm [resolvable:$true] %s38
      %s40 = sshll.u32 [#allocation9], 4
      %s41 = int_to_ptr.vmem [resolvable:$true] %s40
      %43 = dma.hbm_to_vmem [thread:$0]  %s39, 64, %s41, [#allocation8]
    $region13: #{tpu_custom_call.1} parent=1 // pred_fallthru
      _
    // Predicated region
    $region14: #{tpu_custom_call.1} parent=1 // pred_check
      _
    $region15: #{tpu_custom_call.1} parent=1 // pred_check_branch
      %45 = sbr.rel (0) target = $region17
    $region16: #{tpu_custom_call.1} parent=1 // pred_region
      %47 = dma.done [#allocation5], 320
    $region17: #{tpu_custom_call.1} parent=1 // pred_fallthru
      _
    // Predicated region
    $region18: #{tpu_custom_call.1} parent=1 // pred_check
      _
    $region19: #{tpu_custom_call.1} parent=1 // pred_check_branch
      %49 = sbr.rel (0) target = $region21
    $region20: #{tpu_custom_call.1} parent=1 // pred_region
      %51 = dma.done [#allocation8], 64
    $region21: #{tpu_custom_call.1} parent=1 // pred_fallthru
      _
    // Predicated region
    $region22: #{tpu_custom_call.1} parent=1 // pred_check
      _
    $region23: #{tpu_custom_call.1} parent=1 // pred_check_branch
      %53 = sbr.rel (0) target = $region25
    $region24: #{tpu_custom_call.1} parent=1 // pred_region
      %55 = dma.done [#allocation8], 64
    $region25: #{tpu_custom_call.1} parent=1 // pred_fallthru
      _
    %v56 = vld [vmem:[#allocation4] sm:$0xff]
    %v57 = vld [vmem:[#allocation4 + $0x8] sm:$0xff]
    %v58 = vld [vmem:[#allocation4 + $0x10] sm:$0xf]
    %61 = vst [vmem:[#allocation1] ss:$2 sm:$0xff] %v56
    %s62 = scalar_lea.vmem [#allocation1], 16
    %63 = vst [vmem:[%s62] ss:$2 sm:$0xff] %v57
    %v64 = vld.sshfl [vmem:[#allocation1] sm:$0xff pattern:$0x75316420]
    %v65 = vld.sshfl [vmem:[#allocation1 + $0x8] sm:$0xff pattern:$0x75316420]
    %v66 = vld.sshfl [vmem:[#allocation1 + $0x10] sm:$0xff pattern:$0x75316420]
    %v67 = vld.sshfl [vmem:[#allocation1 + $0x18] sm:$0xff pattern:$0x75316420]
    %72 = vst [vmem:[#allocation2] sm:$0xf] %v64
    %73 = vst [vmem:[#allocation2 + $0x8] sm:$0xf] %v65
    %74 = vst [vmem:[#allocation2 + $0x10] sm:$0xf] %v66
    %75 = vst [vmem:[#allocation2 + $0x18] sm:$0xf] %v67
    %s77 = scalar_lea.vmem [#allocation1], 1
    %78 = vst [vmem:[%s77] ss:$2 sm:$0xff] %v56
    %s79 = scalar_lea.vmem [#allocation1], 17
    %80 = vst [vmem:[%s79] ss:$2 sm:$0xff] %v57
    %s81 = scalar_lea.vmem [#allocation1], 33
    %82 = vst [vmem:[%s81] ss:$2 sm:$0xff] %v58
    %v83 = vld.sshfl [vmem:[#allocation1] sm:$0xff pattern:$0x75316420]
    %v84 = vld.sshfl [vmem:[#allocation1 + $0x8] sm:$0xff pattern:$0x75316420]
    %v85 = vld.sshfl [vmem:[#allocation1 + $0x10] sm:$0xff pattern:$0x75316420]
    %v86 = vld.sshfl [vmem:[#allocation1 + $0x18] sm:$0xff pattern:$0x75316420]
    %v87 = vld.sshfl [vmem:[#allocation1 + $0x20] sm:$0xff pattern:$0x75316420]
    %88 = vrot.lane.b32.xlu0 %v83, 127
    %v89 = vpop.permute.xlu0 %88
    %90 = vrot.lane.b32.xlu0 %v84, 127
    %v91 = vpop.permute.xlu0 %90
    %92 = vrot.lane.b32.xlu0 %v85, 127
    %v93 = vpop.permute.xlu0 %92
    %94 = vrot.lane.b32.xlu0 %v86, 127
    %v95 = vpop.permute.xlu0 %94
    %96 = vrot.lane.b32.xlu0 %v87, 127
    %v97 = vpop.permute.xlu0 %96
    %vm98 = vcmask 1039360
    %v99 = vsel %vm98, %v89, %v91
    %v100 = vsel %vm98, %v91, %v93
    %v101 = vsel %vm98, %v93, %v95
    %v102 = vsel %vm98, %v95, %v97
    %107 = vst [vmem:[#allocation2] sm:$0xf0] %v99
    %108 = vst [vmem:[#allocation2 + $0x8] sm:$0xf0] %v100
    %109 = vst [vmem:[#allocation2 + $0x10] sm:$0xf0] %v101
    %110 = vst [vmem:[#allocation2 + $0x18] sm:$0xf0] %v102
    %111 = vst [vmem:[#allocation1] ss:$2 sm:$0xff] %v56
    %s112 = scalar_lea.vmem [#allocation1], 16
    %113 = vst [vmem:[%s112] ss:$2 sm:$0xff] %v57
    %s114 = scalar_lea.vmem [#allocation1], 32
    %115 = vst [vmem:[%s114] ss:$2 sm:$0xff] %v58
    %v116 = vld.sshfl [vmem:[#allocation1] sm:$0xff pattern:$0x75316420]
    %v117 = vld.sshfl [vmem:[#allocation1 + $0x8] sm:$0xff pattern:$0x75316420]
    %v118 = vld.sshfl [vmem:[#allocation1 + $0x10] sm:$0xff pattern:$0x75316420]
    %v119 = vld.sshfl [vmem:[#allocation1 + $0x18] sm:$0xff pattern:$0x75316420]
    %v120 = vld.sshfl [vmem:[#allocation1 + $0x20] sm:$0xff pattern:$0x75316420]
    %121 = vrot.lane.b32.xlu0 %v116, 126
    %v122 = vpop.permute.xlu0 %121
    %123 = vrot.lane.b32.xlu0 %v117, 126
    %v124 = vpop.permute.xlu0 %123
    %125 = vrot.lane.b32.xlu0 %v118, 126
    %v126 = vpop.permute.xlu0 %125
    %127 = vrot.lane.b32.xlu0 %v119, 126
    %v128 = vpop.permute.xlu0 %127
    %129 = vrot.lane.b32.xlu0 %v120, 126
    %v130 = vpop.permute.xlu0 %129
    %vm131 = vcmask 1031168
    %v132 = vsel %vm131, %v122, %v124
    %v133 = vsel %vm131, %v124, %v126
    %v134 = vsel %vm131, %v126, %v128
    %v135 = vsel %vm131, %v128, %v130
    %140 = vst [vmem:[#allocation2 + $0x20] sm:$0xf] %v132
    %141 = vst [vmem:[#allocation2 + $0x28] sm:$0xf] %v133
    %142 = vst [vmem:[#allocation2 + $0x30] sm:$0xf] %v134
    %143 = vst [vmem:[#allocation2 + $0x38] sm:$0xf] %v135
    %s144 = scalar_lea.vmem [#allocation1], 1
    %145 = vst [vmem:[%s144] ss:$2 sm:$0xff] %v56
    %s146 = scalar_lea.vmem [#allocation1], 17
    %147 = vst [vmem:[%s146] ss:$2 sm:$0xff] %v57
    %s148 = scalar_lea.vmem [#allocation1], 33
    %149 = vst [vmem:[%s148] ss:$2 sm:$0xff] %v58
    %v150 = vld.sshfl [vmem:[#allocation1] sm:$0xff pattern:$0x75316420]
    %v151 = vld.sshfl [vmem:[#allocation1 + $0x8] sm:$0xff pattern:$0x75316420]
    %v152 = vld.sshfl [vmem:[#allocation1 + $0x10] sm:$0xff pattern:$0x75316420]
    %v153 = vld.sshfl [vmem:[#allocation1 + $0x18] sm:$0xff pattern:$0x75316420]
    %v154 = vld.sshfl [vmem:[#allocation1 + $0x20] sm:$0xff pattern:$0x75316420]
    %155 = vrot.lane.b32.xlu0 %v150, 125
    %v156 = vpop.permute.xlu0 %155
    %157 = vrot.lane.b32.xlu0 %v151, 125
    %v158 = vpop.permute.xlu0 %157
    %159 = vrot.lane.b32.xlu0 %v152, 125
    %v160 = vpop.permute.xlu0 %159
    %161 = vrot.lane.b32.xlu0 %v153, 125
    %v162 = vpop.permute.xlu0 %161
    %163 = vrot.lane.b32.xlu0 %v154, 125
    %v164 = vpop.permute.xlu0 %163
    %vm165 = vcmask 1022976
    %v166 = vsel %vm165, %v156, %v158
    %v167 = vsel %vm165, %v158, %v160
    %v168 = vsel %vm165, %v160, %v162
    %v169 = vsel %vm165, %v162, %v164
    %174 = vst [vmem:[#allocation2 + $0x20] sm:$0xf0] %v166
    %175 = vst [vmem:[#allocation2 + $0x28] sm:$0xf0] %v167
    %176 = vst [vmem:[#allocation2 + $0x30] sm:$0xf0] %v168
    %177 = vst [vmem:[#allocation2 + $0x38] sm:$0xf0] %v169
    %178 = vst [vmem:[#allocation1] ss:$2 sm:$0xff] %v56
    %s179 = scalar_lea.vmem [#allocation1], 16
    %180 = vst [vmem:[%s179] ss:$2 sm:$0xff] %v57
    %s181 = scalar_lea.vmem [#allocation1], 32
    %182 = vst [vmem:[%s181] ss:$2 sm:$0xff] %v58
    %v183 = vld.sshfl [vmem:[#allocation1] sm:$0xff pattern:$0x75316420]
    %v184 = vld.sshfl [vmem:[#allocation1 + $0x8] sm:$0xff pattern:$0x75316420]
    %v185 = vld.sshfl [vmem:[#allocation1 + $0x10] sm:$0xff pattern:$0x75316420]
    %v186 = vld.sshfl [vmem:[#allocation1 + $0x18] sm:$0xff pattern:$0x75316420]
    %v187 = vld.sshfl [vmem:[#allocation1 + $0x20] sm:$0xff pattern:$0x75316420]
    %188 = vrot.lane.b32.xlu0 %v183, 124
    %v189 = vpop.permute.xlu0 %188
    %190 = vrot.lane.b32.xlu0 %v184, 124
    %v191 = vpop.permute.xlu0 %190
    %192 = vrot.lane.b32.xlu0 %v185, 124
    %v193 = vpop.permute.xlu0 %192
    %194 = vrot.lane.b32.xlu0 %v186, 124
    %v195 = vpop.permute.xlu0 %194
    %196 = vrot.lane.b32.xlu0 %v187, 124
    %v197 = vpop.permute.xlu0 %196
    %vm198 = vcmask 1014784
    %v199 = vsel %vm198, %v189, %v191
    %v200 = vsel %vm198, %v191, %v193
    %v201 = vsel %vm198, %v193, %v195
    %v202 = vsel %vm198, %v195, %v197
    %207 = vst [vmem:[#allocation2 + $0x40] sm:$0xf] %v199
    %208 = vst [vmem:[#allocation2 + $0x48] sm:$0xf] %v200
    %209 = vst [vmem:[#allocation2 + $0x50] sm:$0xf] %v201
    %210 = vst [vmem:[#allocation2 + $0x58] sm:$0xf] %v202
    %s211 = scalar_lea.vmem [#allocation1], 1
    %212 = vst [vmem:[%s211] ss:$2 sm:$0xff] %v56
    %s213 = scalar_lea.vmem [#allocation1], 17
    %214 = vst [vmem:[%s213] ss:$2 sm:$0xff] %v57
    %s215 = scalar_lea.vmem [#allocation1], 33
    %216 = vst [vmem:[%s215] ss:$2 sm:$0xff] %v58
    %v217 = vld.sshfl [vmem:[#allocation1] sm:$0xff pattern:$0x75316420]
    %v218 = vld.sshfl [vmem:[#allocation1 + $0x8] sm:$0xff pattern:$0x75316420]
    %v219 = vld.sshfl [vmem:[#allocation1 + $0x10] sm:$0xff pattern:$0x75316420]
    %v220 = vld.sshfl [vmem:[#allocation1 + $0x18] sm:$0xff pattern:$0x75316420]
    %v221 = vld.sshfl [vmem:[#allocation1 + $0x20] sm:$0xff pattern:$0x75316420]
    %222 = vrot.lane.b32.xlu0 %v217, 112
    %v223 = vpop.permute.xlu0 %222
    %224 = vrot.lane.b32.xlu0 %v218, 112
    %v225 = vpop.permute.xlu0 %224
    %226 = vrot.lane.b32.xlu0 %v219, 112
    %v227 = vpop.permute.xlu0 %226
    %228 = vrot.lane.b32.xlu0 %v220, 112
    %v229 = vpop.permute.xlu0 %228
    %230 = vrot.lane.b32.xlu0 %v221, 112
    %v231 = vpop.permute.xlu0 %230
    %vm232 = vcmask 916480
    %v233 = vsel %vm232, %v223, %v225
    %v234 = vsel %vm232, %v225, %v227
    %v235 = vsel %vm232, %v227, %v229
    %v236 = vsel %vm232, %v229, %v231
    %241 = vst [vmem:[#allocation2 + $0x40] sm:$0xf0] %v233
    %242 = vst [vmem:[#allocation2 + $0x48] sm:$0xf0] %v234
    %243 = vst [vmem:[#allocation2 + $0x50] sm:$0xf0] %v235
    %244 = vst [vmem:[#allocation2 + $0x58] sm:$0xf0] %v236
    %245 = vst [vmem:[#allocation1] ss:$2 sm:$0xff] %v56
    %s246 = scalar_lea.vmem [#allocation1], 16
    %247 = vst [vmem:[%s246] ss:$2 sm:$0xff] %v57
    %s248 = scalar_lea.vmem [#allocation1], 32
    %249 = vst [vmem:[%s248] ss:$2 sm:$0xff] %v58
    %v250 = vld.sshfl [vmem:[#allocation1] sm:$0xff pattern:$0x75316420]
    %v251 = vld.sshfl [vmem:[#allocation1 + $0x8] sm:$0xff pattern:$0x75316420]
    %v252 = vld.sshfl [vmem:[#allocation1 + $0x10] sm:$0xff pattern:$0x75316420]
    %v253 = vld.sshfl [vmem:[#allocation1 + $0x18] sm:$0xff pattern:$0x75316420]
    %v254 = vld.sshfl [vmem:[#allocation1 + $0x20] sm:$0xff pattern:$0x75316420]
    %255 = vrot.lane.b32.xlu0 %v250, 111
    %v256 = vpop.permute.xlu0 %255
    %257 = vrot.lane.b32.xlu0 %v251, 111
    %v258 = vpop.permute.xlu0 %257
    %259 = vrot.lane.b32.xlu0 %v252, 111
    %v260 = vpop.permute.xlu0 %259
    %261 = vrot.lane.b32.xlu0 %v253, 111
    %v262 = vpop.permute.xlu0 %261
    %263 = vrot.lane.b32.xlu0 %v254, 111
    %v264 = vpop.permute.xlu0 %263
    %vm265 = vcmask 908288
    %v266 = vsel %vm265, %v256, %v258
    %v267 = vsel %vm265, %v258, %v260
    %v268 = vsel %vm265, %v260, %v262
    %v269 = vsel %vm265, %v262, %v264
    %274 = vst [vmem:[#allocation2 + $0x60] sm:$0xf] %v266
    %275 = vst [vmem:[#allocation2 + $0x68] sm:$0xf] %v267
    %276 = vst [vmem:[#allocation2 + $0x70] sm:$0xf] %v268
    %277 = vst [vmem:[#allocation2 + $0x78] sm:$0xf] %v269
    %s278 = scalar_lea.vmem [#allocation1], 1
    %279 = vst [vmem:[%s278] ss:$2 sm:$0xff] %v56
    %s280 = scalar_lea.vmem [#allocation1], 17
    %281 = vst [vmem:[%s280] ss:$2 sm:$0xff] %v57
    %s282 = scalar_lea.vmem [#allocation1], 33
    %283 = vst [vmem:[%s282] ss:$2 sm:$0xff] %v58
    %v284 = vld.sshfl [vmem:[#allocation1] sm:$0xff pattern:$0x75316420]
    %v285 = vld.sshfl [vmem:[#allocation1 + $0x8] sm:$0xff pattern:$0x75316420]
    %v286 = vld.sshfl [vmem:[#allocation1 + $0x10] sm:$0xff pattern:$0x75316420]
    %v287 = vld.sshfl [vmem:[#allocation1 + $0x18] sm:$0xff pattern:$0x75316420]
    %v288 = vld.sshfl [vmem:[#allocation1 + $0x20] sm:$0xff pattern:$0x75316420]
    %289 = vrot.lane.b32.xlu0 %v284, 110
    %v290 = vpop.permute.xlu0 %289
    %291 = vrot.lane.b32.xlu0 %v285, 110
    %v292 = vpop.permute.xlu0 %291
    %293 = vrot.lane.b32.xlu0 %v286, 110
    %v294 = vpop.permute.xlu0 %293
    %295 = vrot.lane.b32.xlu0 %v287, 110
    %v296 = vpop.permute.xlu0 %295
    %297 = vrot.lane.b32.xlu0 %v288, 110
    %v298 = vpop.permute.xlu0 %297
    %vm299 = vcmask 900096
    %v300 = vsel %vm299, %v290, %v292
    %v301 = vsel %vm299, %v292, %v294
    %v302 = vsel %vm299, %v294, %v296
    %v303 = vsel %vm299, %v296, %v298
    %308 = vst [vmem:[#allocation2 + $0x60] sm:$0xf0] %v300
    %309 = vst [vmem:[#allocation2 + $0x68] sm:$0xf0] %v301
    %310 = vst [vmem:[#allocation2 + $0x70] sm:$0xf0] %v302
    %311 = vst [vmem:[#allocation2 + $0x78] sm:$0xf0] %v303
    %312 = vst [vmem:[#allocation1] ss:$2 sm:$0xff] %v56
    %s313 = scalar_lea.vmem [#allocation1], 16
    %314 = vst [vmem:[%s313] ss:$2 sm:$0xff] %v57
    %s315 = scalar_lea.vmem [#allocation1], 32
    %316 = vst [vmem:[%s315] ss:$2 sm:$0xff] %v58
    %v317 = vld.sshfl [vmem:[#allocation1] sm:$0xff pattern:$0x75316420]
    %v318 = vld.sshfl [vmem:[#allocation1 + $0x8] sm:$0xff pattern:$0x75316420]
    %v319 = vld.sshfl [vmem:[#allocation1 + $0x10] sm:$0xff pattern:$0x75316420]
    %v320 = vld.sshfl [vmem:[#allocation1 + $0x18] sm:$0xff pattern:$0x75316420]
    %v321 = vld.sshfl [vmem:[#allocation1 + $0x20] sm:$0xff pattern:$0x75316420]
    %322 = vrot.lane.b32.xlu0 %v317, 109
    %v323 = vpop.permute.xlu0 %322
    %324 = vrot.lane.b32.xlu0 %v318, 109
    %v325 = vpop.permute.xlu0 %324
    %326 = vrot.lane.b32.xlu0 %v319, 109
    %v327 = vpop.permute.xlu0 %326
    %328 = vrot.lane.b32.xlu0 %v320, 109
    %v329 = vpop.permute.xlu0 %328
    %330 = vrot.lane.b32.xlu0 %v321, 109
    %v331 = vpop.permute.xlu0 %330
    %vm332 = vcmask 891904
    %v333 = vsel %vm332, %v323, %v325
    %v334 = vsel %vm332, %v325, %v327
    %v335 = vsel %vm332, %v327, %v329
    %v336 = vsel %vm332, %v329, %v331
    %341 = vst [vmem:[#allocation2 + $0x80] sm:$0xf] %v333
    %342 = vst [vmem:[#allocation2 + $0x88] sm:$0xf] %v334
    %343 = vst [vmem:[#allocation2 + $0x90] sm:$0xf] %v335
    %344 = vst [vmem:[#allocation2 + $0x98] sm:$0xf] %v336
    %s345 = scalar_lea.vmem [#allocation1], 1
    %346 = vst [vmem:[%s345] ss:$2 sm:$0xff] %v56
    %s347 = scalar_lea.vmem [#allocation1], 17
    %348 = vst [vmem:[%s347] ss:$2 sm:$0xff] %v57
    %s349 = scalar_lea.vmem [#allocation1], 33
    %350 = vst [vmem:[%s349] ss:$2 sm:$0xff] %v58
    %v351 = vld.sshfl [vmem:[#allocation1] sm:$0xff pattern:$0x75316420]
    %v352 = vld.sshfl [vmem:[#allocation1 + $0x8] sm:$0xff pattern:$0x75316420]
    %v353 = vld.sshfl [vmem:[#allocation1 + $0x10] sm:$0xff pattern:$0x75316420]
    %v354 = vld.sshfl [vmem:[#allocation1 + $0x18] sm:$0xff pattern:$0x75316420]
    %v355 = vld.sshfl [vmem:[#allocation1 + $0x20] sm:$0xff pattern:$0x75316420]
    %356 = vrot.lane.b32.xlu0 %v351, 108
    %v357 = vpop.permute.xlu0 %356
    %358 = vrot.lane.b32.xlu0 %v352, 108
    %v359 = vpop.permute.xlu0 %358
    %360 = vrot.lane.b32.xlu0 %v353, 108
    %v361 = vpop.permute.xlu0 %360
    %362 = vrot.lane.b32.xlu0 %v354, 108
    %v363 = vpop.permute.xlu0 %362
    %364 = vrot.lane.b32.xlu0 %v355, 108
    %v365 = vpop.permute.xlu0 %364
    %vm366 = vcmask 883712
    %v367 = vsel %vm366, %v357, %v359
    %v368 = vsel %vm366, %v359, %v361
    %v369 = vsel %vm366, %v361, %v363
    %v370 = vsel %vm366, %v363, %v365
    %375 = vst [vmem:[#allocation2 + $0x80] sm:$0xf0] %v367
    %376 = vst [vmem:[#allocation2 + $0x88] sm:$0xf0] %v368
    %377 = vst [vmem:[#allocation2 + $0x90] sm:$0xf0] %v369
    %378 = vst [vmem:[#allocation2 + $0x98] sm:$0xf0] %v370
    %379 = vst [vmem:[#allocation1] ss:$2 sm:$0xff] %v56
    %s380 = scalar_lea.vmem [#allocation1], 16
    %381 = vst [vmem:[%s380] ss:$2 sm:$0xff] %v57
    %s382 = scalar_lea.vmem [#allocation1], 32
    %383 = vst [vmem:[%s382] ss:$2 sm:$0xff] %v58
    %v384 = vld.sshfl [vmem:[#allocation1] sm:$0xff pattern:$0x75316420]
    %v385 = vld.sshfl [vmem:[#allocation1 + $0x8] sm:$0xff pattern:$0x75316420]
    %v386 = vld.sshfl [vmem:[#allocation1 + $0x10] sm:$0xff pattern:$0x75316420]
    %v387 = vld.sshfl [vmem:[#allocation1 + $0x18] sm:$0xff pattern:$0x75316420]
    %v388 = vld.sshfl [vmem:[#allocation1 + $0x20] sm:$0xff pattern:$0x75316420]
    %389 = vrot.lane.b32.xlu0 %v384, 96
    %v390 = vpop.permute.xlu0 %389
    %391 = vrot.lane.b32.xlu0 %v385, 96
    %v392 = vpop.permute.xlu0 %391
    %393 = vrot.lane.b32.xlu0 %v386, 96
    %v394 = vpop.permute.xlu0 %393
    %395 = vrot.lane.b32.xlu0 %v387, 96
    %v396 = vpop.permute.xlu0 %395
    %397 = vrot.lane.b32.xlu0 %v388, 96
    %v398 = vpop.permute.xlu0 %397
    %vm399 = vcmask 785408
    %v400 = vsel %vm399, %v390, %v392
    %v401 = vsel %vm399, %v392, %v394
    %v402 = vsel %vm399, %v394, %v396
    %v403 = vsel %vm399, %v396, %v398
    %408 = vst [vmem:[#allocation2 + $0xa0] sm:$0xf] %v400
    %409 = vst [vmem:[#allocation2 + $0xa8] sm:$0xf] %v401
    %410 = vst [vmem:[#allocation2 + $0xb0] sm:$0xf] %v402
    %411 = vst [vmem:[#allocation2 + $0xb8] sm:$0xf] %v403
    %s412 = scalar_lea.vmem [#allocation1], 1
    %413 = vst [vmem:[%s412] ss:$2 sm:$0xff] %v56
    %s414 = scalar_lea.vmem [#allocation1], 17
    %415 = vst [vmem:[%s414] ss:$2 sm:$0xff] %v57
    %s416 = scalar_lea.vmem [#allocation1], 33
    %417 = vst [vmem:[%s416] ss:$2 sm:$0xff] %v58
    %v418 = vld.sshfl [vmem:[#allocation1] sm:$0xff pattern:$0x75316420]
    %v419 = vld.sshfl [vmem:[#allocation1 + $0x8] sm:$0xff pattern:$0x75316420]
    %v420 = vld.sshfl [vmem:[#allocation1 + $0x10] sm:$0xff pattern:$0x75316420]
    %v421 = vld.sshfl [vmem:[#allocation1 + $0x18] sm:$0xff pattern:$0x75316420]
    %v422 = vld.sshfl [vmem:[#allocation1 + $0x20] sm:$0xff pattern:$0x75316420]
    %423 = vrot.lane.b32.xlu0 %v418, 95
    %v424 = vpop.permute.xlu0 %423
    %425 = vrot.lane.b32.xlu0 %v419, 95
    %v426 = vpop.permute.xlu0 %425
    %427 = vrot.lane.b32.xlu0 %v420, 95
    %v428 = vpop.permute.xlu0 %427
    %429 = vrot.lane.b32.xlu0 %v421, 95
    %v430 = vpop.permute.xlu0 %429
    %431 = vrot.lane.b32.xlu0 %v422, 95
    %v432 = vpop.permute.xlu0 %431
    %vm433 = vcmask 777216
    %v434 = vsel %vm433, %v424, %v426
    %v435 = vsel %vm433, %v426, %v428
    %v436 = vsel %vm433, %v428, %v430
    %v437 = vsel %vm433, %v430, %v432
    %442 = vst [vmem:[#allocation2 + $0xa0] sm:$0xf0] %v434
    %443 = vst [vmem:[#allocation2 + $0xa8] sm:$0xf0] %v435
    %444 = vst [vmem:[#allocation2 + $0xb0] sm:$0xf0] %v436
    %445 = vst [vmem:[#allocation2 + $0xb8] sm:$0xf0] %v437
    %446 = vst [vmem:[#allocation1] ss:$2 sm:$0xff] %v56
    %s447 = scalar_lea.vmem [#allocation1], 16
    %448 = vst [vmem:[%s447] ss:$2 sm:$0xff] %v57
    %s449 = scalar_lea.vmem [#allocation1], 32
    %450 = vst [vmem:[%s449] ss:$2 sm:$0xff] %v58
    %v451 = vld.sshfl [vmem:[#allocation1] sm:$0xff pattern:$0x75316420]
    %v452 = vld.sshfl [vmem:[#allocation1 + $0x8] sm:$0xff pattern:$0x75316420]
    %v453 = vld.sshfl [vmem:[#allocation1 + $0x10] sm:$0xff pattern:$0x75316420]
    %v454 = vld.sshfl [vmem:[#allocation1 + $0x18] sm:$0xff pattern:$0x75316420]
    %v455 = vld.sshfl [vmem:[#allocation1 + $0x20] sm:$0xff pattern:$0x75316420]
    %456 = vrot.lane.b32.xlu0 %v451, 94
    %v457 = vpop.permute.xlu0 %456
    %458 = vrot.lane.b32.xlu0 %v452, 94
    %v459 = vpop.permute.xlu0 %458
    %460 = vrot.lane.b32.xlu0 %v453, 94
    %v461 = vpop.permute.xlu0 %460
    %462 = vrot.lane.b32.xlu0 %v454, 94
    %v463 = vpop.permute.xlu0 %462
    %464 = vrot.lane.b32.xlu0 %v455, 94
    %v465 = vpop.permute.xlu0 %464
    %vm466 = vcmask 769024
    %v467 = vsel %vm466, %v457, %v459
    %v468 = vsel %vm466, %v459, %v461
    %v469 = vsel %vm466, %v461, %v463
    %v470 = vsel %vm466, %v463, %v465
    %475 = vst [vmem:[#allocation2 + $0xc0] sm:$0xf] %v467
    %476 = vst [vmem:[#allocation2 + $0xc8] sm:$0xf] %v468
    %477 = vst [vmem:[#allocation2 + $0xd0] sm:$0xf] %v469
    %478 = vst [vmem:[#allocation2 + $0xd8] sm:$0xf] %v470
    %s479 = scalar_lea.vmem [#allocation1], 1
    %480 = vst [vmem:[%s479] ss:$2 sm:$0xff] %v56
    %s481 = scalar_lea.vmem [#allocation1], 17
    %482 = vst [vmem:[%s481] ss:$2 sm:$0xff] %v57
    %s483 = scalar_lea.vmem [#allocation1], 33
    %484 = vst [vmem:[%s483] ss:$2 sm:$0xff] %v58
    %v485 = vld.sshfl [vmem:[#allocation1] sm:$0xff pattern:$0x75316420]
    %v486 = vld.sshfl [vmem:[#allocation1 + $0x8] sm:$0xff pattern:$0x75316420]
    %v487 = vld.sshfl [vmem:[#allocation1 + $0x10] sm:$0xff pattern:$0x75316420]
    %v488 = vld.sshfl [vmem:[#allocation1 + $0x18] sm:$0xff pattern:$0x75316420]
    %v489 = vld.sshfl [vmem:[#allocation1 + $0x20] sm:$0xff pattern:$0x75316420]
    %490 = vrot.lane.b32.xlu0 %v485, 93
    %v491 = vpop.permute.xlu0 %490
    %492 = vrot.lane.b32.xlu0 %v486, 93
    %v493 = vpop.permute.xlu0 %492
    %494 = vrot.lane.b32.xlu0 %v487, 93
    %v495 = vpop.permute.xlu0 %494
    %496 = vrot.lane.b32.xlu0 %v488, 93
    %v497 = vpop.permute.xlu0 %496
    %498 = vrot.lane.b32.xlu0 %v489, 93
    %v499 = vpop.permute.xlu0 %498
    %vm500 = vcmask 760832
    %v501 = vsel %vm500, %v491, %v493
    %v502 = vsel %vm500, %v493, %v495
    %v503 = vsel %vm500, %v495, %v497
    %v504 = vsel %vm500, %v497, %v499
    %509 = vst [vmem:[#allocation2 + $0xc0] sm:$0xf0] %v501
    %510 = vst [vmem:[#allocation2 + $0xc8] sm:$0xf0] %v502
    %511 = vst [vmem:[#allocation2 + $0xd0] sm:$0xf0] %v503
    %512 = vst [vmem:[#allocation2 + $0xd8] sm:$0xf0] %v504
    %513 = vst [vmem:[#allocation1] ss:$2 sm:$0xff] %v56
    %s514 = scalar_lea.vmem [#allocation1], 16
    %515 = vst [vmem:[%s514] ss:$2 sm:$0xff] %v57
    %s516 = scalar_lea.vmem [#allocation1], 32
    %517 = vst [vmem:[%s516] ss:$2 sm:$0xff] %v58
    %v518 = vld.sshfl [vmem:[#allocation1] sm:$0xff pattern:$0x75316420]
    %v519 = vld.sshfl [vmem:[#allocation1 + $0x8] sm:$0xff pattern:$0x75316420]
    %v520 = vld.sshfl [vmem:[#allocation1 + $0x10] sm:$0xff pattern:$0x75316420]
    %v521 = vld.sshfl [vmem:[#allocation1 + $0x18] sm:$0xff pattern:$0x75316420]
    %v522 = vld.sshfl [vmem:[#allocation1 + $0x20] sm:$0xff pattern:$0x75316420]
    %523 = vrot.lane.b32.xlu0 %v518, 92
    %v524 = vpop.permute.xlu0 %523
    %525 = vrot.lane.b32.xlu0 %v519, 92
    %v526 = vpop.permute.xlu0 %525
    %527 = vrot.lane.b32.xlu0 %v520, 92
    %v528 = vpop.permute.xlu0 %527
    %529 = vrot.lane.b32.xlu0 %v521, 92
    %v530 = vpop.permute.xlu0 %529
    %531 = vrot.lane.b32.xlu0 %v522, 92
    %v532 = vpop.permute.xlu0 %531
    %vm533 = vcmask 752640
    %v534 = vsel %vm533, %v524, %v526
    %v535 = vsel %vm533, %v526, %v528
    %v536 = vsel %vm533, %v528, %v530
    %v537 = vsel %vm533, %v530, %v532
    %542 = vst [vmem:[#allocation2 + $0xe0] sm:$0xf] %v534
    %543 = vst [vmem:[#allocation2 + $0xe8] sm:$0xf] %v535
    %544 = vst [vmem:[#allocation2 + $0xf0] sm:$0xf] %v536
    %545 = vst [vmem:[#allocation2 + $0xf8] sm:$0xf] %v537
    %s546 = scalar_lea.vmem [#allocation1], 1
    %547 = vst [vmem:[%s546] ss:$2 sm:$0xff] %v56
    %s548 = scalar_lea.vmem [#allocation1], 17
    %549 = vst [vmem:[%s548] ss:$2 sm:$0xff] %v57
    %s550 = scalar_lea.vmem [#allocation1], 33
    %551 = vst [vmem:[%s550] ss:$2 sm:$0xff] %v58
    %v552 = vld.sshfl [vmem:[#allocation1] sm:$0xff pattern:$0x75316420]
    %v553 = vld.sshfl [vmem:[#allocation1 + $0x8] sm:$0xff pattern:$0x75316420]
    %v554 = vld.sshfl [vmem:[#allocation1 + $0x10] sm:$0xff pattern:$0x75316420]
    %v555 = vld.sshfl [vmem:[#allocation1 + $0x18] sm:$0xff pattern:$0x75316420]
    %v556 = vld.sshfl [vmem:[#allocation1 + $0x20] sm:$0xff pattern:$0x75316420]
    %557 = vrot.lane.b32.xlu0 %v552, 80
    %v558 = vpop.permute.xlu0 %557
    %559 = vrot.lane.b32.xlu0 %v553, 80
    %v560 = vpop.permute.xlu0 %559
    %561 = vrot.lane.b32.xlu0 %v554, 80
    %v562 = vpop.permute.xlu0 %561
    %563 = vrot.lane.b32.xlu0 %v555, 80
    %v564 = vpop.permute.xlu0 %563
    %565 = vrot.lane.b32.xlu0 %v556, 80
    %v566 = vpop.permute.xlu0 %565
    %vm567 = vcmask 654336
    %v568 = vsel %vm567, %v558, %v560
    %v569 = vsel %vm567, %v560, %v562
    %v570 = vsel %vm567, %v562, %v564
    %v571 = vsel %vm567, %v564, %v566
    %576 = vst [vmem:[#allocation2 + $0xe0] sm:$0xf0] %v568
    %577 = vst [vmem:[#allocation2 + $0xe8] sm:$0xf0] %v569
    %578 = vst [vmem:[#allocation2 + $0xf0] sm:$0xf0] %v570
    %579 = vst [vmem:[#allocation2 + $0xf8] sm:$0xf0] %v571
    %580 = vst [vmem:[#allocation1] ss:$2 sm:$0xff] %v56
    %s581 = scalar_lea.vmem [#allocation1], 16
    %582 = vst [vmem:[%s581] ss:$2 sm:$0xff] %v57
    %s583 = scalar_lea.vmem [#allocation1], 32
    %584 = vst [vmem:[%s583] ss:$2 sm:$0xff] %v58
    %v585 = vld.sshfl [vmem:[#allocation1] sm:$0xff pattern:$0x75316420]
    %v586 = vld.sshfl [vmem:[#allocation1 + $0x8] sm:$0xff pattern:$0x75316420]
    %v587 = vld.sshfl [vmem:[#allocation1 + $0x10] sm:$0xff pattern:$0x75316420]
    %v588 = vld.sshfl [vmem:[#allocation1 + $0x18] sm:$0xff pattern:$0x75316420]
    %v589 = vld.sshfl [vmem:[#allocation1 + $0x20] sm:$0xff pattern:$0x75316420]
    %590 = vrot.lane.b32.xlu0 %v585, 79
    %v591 = vpop.permute.xlu0 %590
    %592 = vrot.lane.b32.xlu0 %v586, 79
    %v593 = vpop.permute.xlu0 %592
    %594 = vrot.lane.b32.xlu0 %v587, 79
    %v595 = vpop.permute.xlu0 %594
    %596 = vrot.lane.b32.xlu0 %v588, 79
    %v597 = vpop.permute.xlu0 %596
    %598 = vrot.lane.b32.xlu0 %v589, 79
    %v599 = vpop.permute.xlu0 %598
    %vm600 = vcmask 646144
    %v601 = vsel %vm600, %v591, %v593
    %v602 = vsel %vm600, %v593, %v595
    %v603 = vsel %vm600, %v595, %v597
    %v604 = vsel %vm600, %v597, %v599
    %609 = vst [vmem:[#allocation2 + $0x100] sm:$0xf] %v601
    %610 = vst [vmem:[#allocation2 + $0x108] sm:$0xf] %v602
    %611 = vst [vmem:[#allocation2 + $0x110] sm:$0xf] %v603
    %612 = vst [vmem:[#allocation2 + $0x118] sm:$0xf] %v604
    %s613 = scalar_lea.vmem [#allocation1], 1
    %614 = vst [vmem:[%s613] ss:$2 sm:$0xff] %v56
    %s615 = scalar_lea.vmem [#allocation1], 17
    %616 = vst [vmem:[%s615] ss:$2 sm:$0xff] %v57
    %s617 = scalar_lea.vmem [#allocation1], 33
    %618 = vst [vmem:[%s617] ss:$2 sm:$0xff] %v58
    %v619 = vld.sshfl [vmem:[#allocation1] sm:$0xff pattern:$0x75316420]
    %v620 = vld.sshfl [vmem:[#allocation1 + $0x8] sm:$0xff pattern:$0x75316420]
    %v621 = vld.sshfl [vmem:[#allocation1 + $0x10] sm:$0xff pattern:$0x75316420]
    %v622 = vld.sshfl [vmem:[#allocation1 + $0x18] sm:$0xff pattern:$0x75316420]
    %v623 = vld.sshfl [vmem:[#allocation1 + $0x20] sm:$0xff pattern:$0x75316420]
    %624 = vrot.lane.b32.xlu0 %v619, 78
    %v625 = vpop.permute.xlu0 %624
    %626 = vrot.lane.b32.xlu0 %v620, 78
    %v627 = vpop.permute.xlu0 %626
    %628 = vrot.lane.b32.xlu0 %v621, 78
    %v629 = vpop.permute.xlu0 %628
    %630 = vrot.lane.b32.xlu0 %v622, 78
    %v631 = vpop.permute.xlu0 %630
    %632 = vrot.lane.b32.xlu0 %v623, 78
    %v633 = vpop.permute.xlu0 %632
    %vm634 = vcmask 637952
    %v635 = vsel %vm634, %v625, %v627
    %v636 = vsel %vm634, %v627, %v629
    %v637 = vsel %vm634, %v629, %v631
    %v638 = vsel %vm634, %v631, %v633
    %643 = vst [vmem:[#allocation2 + $0x100] sm:$0xf0] %v635
    %644 = vst [vmem:[#allocation2 + $0x108] sm:$0xf0] %v636
    %645 = vst [vmem:[#allocation2 + $0x110] sm:$0xf0] %v637
    %646 = vst [vmem:[#allocation2 + $0x118] sm:$0xf0] %v638
    %647 = vst [vmem:[#allocation1] ss:$2 sm:$0xff] %v56
    %s648 = scalar_lea.vmem [#allocation1], 16
    %649 = vst [vmem:[%s648] ss:$2 sm:$0xff] %v57
    %s650 = scalar_lea.vmem [#allocation1], 32
    %651 = vst [vmem:[%s650] ss:$2 sm:$0xff] %v58
    %v652 = vld.sshfl [vmem:[#allocation1] sm:$0xff pattern:$0x75316420]
    %v653 = vld.sshfl [vmem:[#allocation1 + $0x8] sm:$0xff pattern:$0x75316420]
    %v654 = vld.sshfl [vmem:[#allocation1 + $0x10] sm:$0xff pattern:$0x75316420]
    %v655 = vld.sshfl [vmem:[#allocation1 + $0x18] sm:$0xff pattern:$0x75316420]
    %v656 = vld.sshfl [vmem:[#allocation1 + $0x20] sm:$0xff pattern:$0x75316420]
    %657 = vrot.lane.b32.xlu0 %v652, 77
    %v658 = vpop.permute.xlu0 %657
    %659 = vrot.lane.b32.xlu0 %v653, 77
    %v660 = vpop.permute.xlu0 %659
    %661 = vrot.lane.b32.xlu0 %v654, 77
    %v662 = vpop.permute.xlu0 %661
    %663 = vrot.lane.b32.xlu0 %v655, 77
    %v664 = vpop.permute.xlu0 %663
    %665 = vrot.lane.b32.xlu0 %v656, 77
    %v666 = vpop.permute.xlu0 %665
    %vm667 = vcmask 629760
    %v668 = vsel %vm667, %v658, %v660
    %v669 = vsel %vm667, %v660, %v662
    %v670 = vsel %vm667, %v662, %v664
    %v671 = vsel %vm667, %v664, %v666
    %676 = vst [vmem:[#allocation2 + $0x120] sm:$0xf] %v668
    %677 = vst [vmem:[#allocation2 + $0x128] sm:$0xf] %v669
    %678 = vst [vmem:[#allocation2 + $0x130] sm:$0xf] %v670
    %679 = vst [vmem:[#allocation2 + $0x138] sm:$0xf] %v671
    %s680 = scalar_lea.vmem [#allocation1], 1
    %681 = vst [vmem:[%s680] ss:$2 sm:$0xff] %v56
    %s682 = scalar_lea.vmem [#allocation1], 17
    %683 = vst [vmem:[%s682] ss:$2 sm:$0xff] %v57
    %s684 = scalar_lea.vmem [#allocation1], 33
    %685 = vst [vmem:[%s684] ss:$2 sm:$0xff] %v58
    %v686 = vld.sshfl [vmem:[#allocation1] sm:$0xff pattern:$0x75316420]
    %v687 = vld.sshfl [vmem:[#allocation1 + $0x8] sm:$0xff pattern:$0x75316420]
    %v688 = vld.sshfl [vmem:[#allocation1 + $0x10] sm:$0xff pattern:$0x75316420]
    %v689 = vld.sshfl [vmem:[#allocation1 + $0x18] sm:$0xff pattern:$0x75316420]
    %v690 = vld.sshfl [vmem:[#allocation1 + $0x20] sm:$0xff pattern:$0x75316420]
    %691 = vrot.lane.b32.xlu0 %v686, 76
    %v692 = vpop.permute.xlu0 %691
    %693 = vrot.lane.b32.xlu0 %v687, 76
    %v694 = vpop.permute.xlu0 %693
    %695 = vrot.lane.b32.xlu0 %v688, 76
    %v696 = vpop.permute.xlu0 %695
    %697 = vrot.lane.b32.xlu0 %v689, 76
    %v698 = vpop.permute.xlu0 %697
    %699 = vrot.lane.b32.xlu0 %v690, 76
    %v700 = vpop.permute.xlu0 %699
    %vm701 = vcmask 621568
    %v702 = vsel %vm701, %v692, %v694
    %v703 = vsel %vm701, %v694, %v696
    %v704 = vsel %vm701, %v696, %v698
    %v705 = vsel %vm701, %v698, %v700
    %710 = vst [vmem:[#allocation2 + $0x120] sm:$0xf0] %v702
    %711 = vst [vmem:[#allocation2 + $0x128] sm:$0xf0] %v703
    %712 = vst [vmem:[#allocation2 + $0x130] sm:$0xf0] %v704
    %713 = vst [vmem:[#allocation2 + $0x138] sm:$0xf0] %v705
    %714 = vst [vmem:[#allocation1] ss:$2 sm:$0xff] %v56
    %s715 = scalar_lea.vmem [#allocation1], 16
    %716 = vst [vmem:[%s715] ss:$2 sm:$0xff] %v57
    %s717 = scalar_lea.vmem [#allocation1], 32
    %718 = vst [vmem:[%s717] ss:$2 sm:$0xff] %v58
    %v719 = vld.sshfl [vmem:[#allocation1] sm:$0xff pattern:$0x75316420]
    %v720 = vld.sshfl [vmem:[#allocation1 + $0x8] sm:$0xff pattern:$0x75316420]
    %v721 = vld.sshfl [vmem:[#allocation1 + $0x10] sm:$0xff pattern:$0x75316420]
    %v722 = vld.sshfl [vmem:[#allocation1 + $0x18] sm:$0xff pattern:$0x75316420]
    %v723 = vld.sshfl [vmem:[#allocation1 + $0x20] sm:$0xff pattern:$0x75316420]
    %724 = vrot.lane.b32.xlu0 %v719, 64
    %v725 = vpop.permute.xlu0 %724
    %726 = vrot.lane.b32.xlu0 %v720, 64
    %v727 = vpop.permute.xlu0 %726
    %728 = vrot.lane.b32.xlu0 %v721, 64
    %v729 = vpop.permute.xlu0 %728
    %730 = vrot.lane.b32.xlu0 %v722, 64
    %v731 = vpop.permute.xlu0 %730
    %732 = vrot.lane.b32.xlu0 %v723, 64
    %v733 = vpop.permute.xlu0 %732
    %vm734 = vcmask 523264
    %v735 = vsel %vm734, %v725, %v727
    %v736 = vsel %vm734, %v727, %v729
    %v737 = vsel %vm734, %v729, %v731
    %v738 = vsel %vm734, %v731, %v733
    %743 = vst [vmem:[#allocation2 + $0x140] sm:$0xf] %v735
    %744 = vst [vmem:[#allocation2 + $0x148] sm:$0xf] %v736
    %745 = vst [vmem:[#allocation2 + $0x150] sm:$0xf] %v737
    %746 = vst [vmem:[#allocation2 + $0x158] sm:$0xf] %v738
    %s747 = scalar_lea.vmem [#allocation1], 1
    %748 = vst [vmem:[%s747] ss:$2 sm:$0xff] %v56
    %s749 = scalar_lea.vmem [#allocation1], 17
    %750 = vst [vmem:[%s749] ss:$2 sm:$0xff] %v57
    %s751 = scalar_lea.vmem [#allocation1], 33
    %752 = vst [vmem:[%s751] ss:$2 sm:$0xff] %v58
    %v753 = vld.sshfl [vmem:[#allocation1] sm:$0xff pattern:$0x75316420]
    %v754 = vld.sshfl [vmem:[#allocation1 + $0x8] sm:$0xff pattern:$0x75316420]
    %v755 = vld.sshfl [vmem:[#allocation1 + $0x10] sm:$0xff pattern:$0x75316420]
    %v756 = vld.sshfl [vmem:[#allocation1 + $0x18] sm:$0xff pattern:$0x75316420]
    %v757 = vld.sshfl [vmem:[#allocation1 + $0x20] sm:$0xff pattern:$0x75316420]
    %758 = vrot.lane.b32.xlu0 %v753, 63
    %v759 = vpop.permute.xlu0 %758
    %760 = vrot.lane.b32.xlu0 %v754, 63
    %v761 = vpop.permute.xlu0 %760
    %762 = vrot.lane.b32.xlu0 %v755, 63
    %v763 = vpop.permute.xlu0 %762
    %764 = vrot.lane.b32.xlu0 %v756, 63
    %v765 = vpop.permute.xlu0 %764
    %766 = vrot.lane.b32.xlu0 %v757, 63
    %v767 = vpop.permute.xlu0 %766
    %vm768 = vcmask 515072
    %v769 = vsel %vm768, %v759, %v761
    %v770 = vsel %vm768, %v761, %v763
    %v771 = vsel %vm768, %v763, %v765
    %v772 = vsel %vm768, %v765, %v767
    %777 = vst [vmem:[#allocation2 + $0x140] sm:$0xf0] %v769
    %778 = vst [vmem:[#allocation2 + $0x148] sm:$0xf0] %v770
    %779 = vst [vmem:[#allocation2 + $0x150] sm:$0xf0] %v771
    %780 = vst [vmem:[#allocation2 + $0x158] sm:$0xf0] %v772
    %781 = vst [vmem:[#allocation1] ss:$2 sm:$0xff] %v56
    %s782 = scalar_lea.vmem [#allocation1], 16
    %783 = vst [vmem:[%s782] ss:$2 sm:$0xff] %v57
    %s784 = scalar_lea.vmem [#allocation1], 32
    %785 = vst [vmem:[%s784] ss:$2 sm:$0xff] %v58
    %v786 = vld.sshfl [vmem:[#allocation1] sm:$0xff pattern:$0x75316420]
    %v787 = vld.sshfl [vmem:[#allocation1 + $0x8] sm:$0xff pattern:$0x75316420]
    %v788 = vld.sshfl [vmem:[#allocation1 + $0x10] sm:$0xff pattern:$0x75316420]
    %v789 = vld.sshfl [vmem:[#allocation1 + $0x18] sm:$0xff pattern:$0x75316420]
    %v790 = vld.sshfl [vmem:[#allocation1 + $0x20] sm:$0xff pattern:$0x75316420]
    %791 = vrot.lane.b32.xlu0 %v786, 62
    %v792 = vpop.permute.xlu0 %791
    %793 = vrot.lane.b32.xlu0 %v787, 62
    %v794 = vpop.permute.xlu0 %793
    %795 = vrot.lane.b32.xlu0 %v788, 62
    %v796 = vpop.permute.xlu0 %795
    %797 = vrot.lane.b32.xlu0 %v789, 62
    %v798 = vpop.permute.xlu0 %797
    %799 = vrot.lane.b32.xlu0 %v790, 62
    %v800 = vpop.permute.xlu0 %799
    %vm801 = vcmask 506880
    %v802 = vsel %vm801, %v792, %v794
    %v803 = vsel %vm801, %v794, %v796
    %v804 = vsel %vm801, %v796, %v798
    %v805 = vsel %vm801, %v798, %v800
    %810 = vst [vmem:[#allocation2 + $0x160] sm:$0xf] %v802
    %811 = vst [vmem:[#allocation2 + $0x168] sm:$0xf] %v803
    %812 = vst [vmem:[#allocation2 + $0x170] sm:$0xf] %v804
    %813 = vst [vmem:[#allocation2 + $0x178] sm:$0xf] %v805
    %s814 = scalar_lea.vmem [#allocation1], 1
    %815 = vst [vmem:[%s814] ss:$2 sm:$0xff] %v56
    %s816 = scalar_lea.vmem [#allocation1], 17
    %817 = vst [vmem:[%s816] ss:$2 sm:$0xff] %v57
    %s818 = scalar_lea.vmem [#allocation1], 33
    %819 = vst [vmem:[%s818] ss:$2 sm:$0xff] %v58
    %v820 = vld.sshfl [vmem:[#allocation1] sm:$0xff pattern:$0x75316420]
    %v821 = vld.sshfl [vmem:[#allocation1 + $0x8] sm:$0xff pattern:$0x75316420]
    %v822 = vld.sshfl [vmem:[#allocation1 + $0x10] sm:$0xff pattern:$0x75316420]
    %v823 = vld.sshfl [vmem:[#allocation1 + $0x18] sm:$0xff pattern:$0x75316420]
    %v824 = vld.sshfl [vmem:[#allocation1 + $0x20] sm:$0xff pattern:$0x75316420]
    %825 = vrot.lane.b32.xlu0 %v820, 61
    %v826 = vpop.permute.xlu0 %825
    %827 = vrot.lane.b32.xlu0 %v821, 61
    %v828 = vpop.permute.xlu0 %827
    %829 = vrot.lane.b32.xlu0 %v822, 61
    %v830 = vpop.permute.xlu0 %829
    %831 = vrot.lane.b32.xlu0 %v823, 61
    %v832 = vpop.permute.xlu0 %831
    %833 = vrot.lane.b32.xlu0 %v824, 61
    %v834 = vpop.permute.xlu0 %833
    %vm835 = vcmask 498688
    %v836 = vsel %vm835, %v826, %v828
    %v837 = vsel %vm835, %v828, %v830
    %v838 = vsel %vm835, %v830, %v832
    %v839 = vsel %vm835, %v832, %v834
    %844 = vst [vmem:[#allocation2 + $0x160] sm:$0xf0] %v836
    %845 = vst [vmem:[#allocation2 + $0x168] sm:$0xf0] %v837
    %846 = vst [vmem:[#allocation2 + $0x170] sm:$0xf0] %v838
    %847 = vst [vmem:[#allocation2 + $0x178] sm:$0xf0] %v839
    %848 = vst [vmem:[#allocation1] ss:$2 sm:$0xff] %v56
    %s849 = scalar_lea.vmem [#allocation1], 16
    %850 = vst [vmem:[%s849] ss:$2 sm:$0xff] %v57
    %s851 = scalar_lea.vmem [#allocation1], 32
    %852 = vst [vmem:[%s851] ss:$2 sm:$0xff] %v58
    %v853 = vld.sshfl [vmem:[#allocation1] sm:$0xff pattern:$0x75316420]
    %v854 = vld.sshfl [vmem:[#allocation1 + $0x8] sm:$0xff pattern:$0x75316420]
    %v855 = vld.sshfl [vmem:[#allocation1 + $0x10] sm:$0xff pattern:$0x75316420]
    %v856 = vld.sshfl [vmem:[#allocation1 + $0x18] sm:$0xff pattern:$0x75316420]
    %v857 = vld.sshfl [vmem:[#allocation1 + $0x20] sm:$0xff pattern:$0x75316420]
    %858 = vrot.lane.b32.xlu0 %v853, 60
    %v859 = vpop.permute.xlu0 %858
    %860 = vrot.lane.b32.xlu0 %v854, 60
    %v861 = vpop.permute.xlu0 %860
    %862 = vrot.lane.b32.xlu0 %v855, 60
    %v863 = vpop.permute.xlu0 %862
    %864 = vrot.lane.b32.xlu0 %v856, 60
    %v865 = vpop.permute.xlu0 %864
    %866 = vrot.lane.b32.xlu0 %v857, 60
    %v867 = vpop.permute.xlu0 %866
    %vm868 = vcmask 490496
    %v869 = vsel %vm868, %v859, %v861
    %v870 = vsel %vm868, %v861, %v863
    %v871 = vsel %vm868, %v863, %v865
    %v872 = vsel %vm868, %v865, %v867
    %877 = vst [vmem:[#allocation2 + $0x180] sm:$0xf] %v869
    %878 = vst [vmem:[#allocation2 + $0x188] sm:$0xf] %v870
    %879 = vst [vmem:[#allocation2 + $0x190] sm:$0xf] %v871
    %880 = vst [vmem:[#allocation2 + $0x198] sm:$0xf] %v872
    %v881 = vld [vmem:[#allocation7] sm:$0xf]
    %v882 = vld [vmem:[#allocation2] sm:$0xff]
    %v883 = vld [vmem:[#allocation2 + $0x8] sm:$0xff]
    %v884 = vld [vmem:[#allocation2 + $0x10] sm:$0xff]
    %v885 = vld [vmem:[#allocation2 + $0x18] sm:$0xff]
    %v886 = vld [vmem:[#allocation2 + $0x20] sm:$0xff]
    %v887 = vld [vmem:[#allocation2 + $0x28] sm:$0xff]
    %v888 = vld [vmem:[#allocation2 + $0x30] sm:$0xff]
    %v889 = vld [vmem:[#allocation2 + $0x38] sm:$0xff]
    %v890 = vld [vmem:[#allocation2 + $0x40] sm:$0xff]
    %v891 = vld [vmem:[#allocation2 + $0x48] sm:$0xff]
    %v892 = vld [vmem:[#allocation2 + $0x50] sm:$0xff]
    %v893 = vld [vmem:[#allocation2 + $0x58] sm:$0xff]
    %v894 = vld [vmem:[#allocation2 + $0x60] sm:$0xff]
    %v895 = vld [vmem:[#allocation2 + $0x68] sm:$0xff]
    %v896 = vld [vmem:[#allocation2 + $0x70] sm:$0xff]
    %v897 = vld [vmem:[#allocation2 + $0x78] sm:$0xff]
    %v898 = vld [vmem:[#allocation2 + $0x80] sm:$0xff]
    %v899 = vld [vmem:[#allocation2 + $0x88] sm:$0xff]
    %v900 = vld [vmem:[#allocation2 + $0x90] sm:$0xff]
    %v901 = vld [vmem:[#allocation2 + $0x98] sm:$0xff]
    %v902 = vld [vmem:[#allocation2 + $0xa0] sm:$0xff]
    %v903 = vld [vmem:[#allocation2 + $0xa8] sm:$0xff]
    %v904 = vld [vmem:[#allocation2 + $0xb0] sm:$0xff]
    %v905 = vld [vmem:[#allocation2 + $0xb8] sm:$0xff]
    %v906 = vld [vmem:[#allocation2 + $0xc0] sm:$0xff]
    %v907 = vld [vmem:[#allocation2 + $0xc8] sm:$0xff]
    %v908 = vld [vmem:[#allocation2 + $0xd0] sm:$0xff]
    %v909 = vld [vmem:[#allocation2 + $0xd8] sm:$0xff]
    %v910 = vld [vmem:[#allocation2 + $0xe0] sm:$0xff]
    %v911 = vld [vmem:[#allocation2 + $0xe8] sm:$0xff]
    %v912 = vld [vmem:[#allocation2 + $0xf0] sm:$0xff]
    %v913 = vld [vmem:[#allocation2 + $0xf8] sm:$0xff]
    %v914 = vld [vmem:[#allocation2 + $0x100] sm:$0xff]
    %v915 = vld [vmem:[#allocation2 + $0x108] sm:$0xff]
    %v916 = vld [vmem:[#allocation2 + $0x110] sm:$0xff]
    %v917 = vld [vmem:[#allocation2 + $0x118] sm:$0xff]
    %v918 = vld [vmem:[#allocation2 + $0x120] sm:$0xff]
    %v919 = vld [vmem:[#allocation2 + $0x128] sm:$0xff]
    %v920 = vld [vmem:[#allocation2 + $0x130] sm:$0xff]
    %v921 = vld [vmem:[#allocation2 + $0x138] sm:$0xff]
    %v922 = vld [vmem:[#allocation2 + $0x140] sm:$0xff]
    %v923 = vld [vmem:[#allocation2 + $0x148] sm:$0xff]
    %v924 = vld [vmem:[#allocation2 + $0x150] sm:$0xff]
    %v925 = vld [vmem:[#allocation2 + $0x158] sm:$0xff]
    %v926 = vld [vmem:[#allocation2 + $0x160] sm:$0xff]
    %v927 = vld [vmem:[#allocation2 + $0x168] sm:$0xff]
    %v928 = vld [vmem:[#allocation2 + $0x170] sm:$0xff]
    %v929 = vld [vmem:[#allocation2 + $0x178] sm:$0xff]
    %v930 = vld [vmem:[#allocation2 + $0x180] sm:$0xf]
    %v931 = vld [vmem:[#allocation2 + $0x188] sm:$0xf]
    %v932 = vld [vmem:[#allocation2 + $0x190] sm:$0xf]
    %v933 = vld [vmem:[#allocation2 + $0x198] sm:$0xf]
    %vm934 = vcmask 818176
    %v936 = vsel %vm934, %v881, 0
    %vm938 = vcmask 1043456
    %v940 = vsel %vm938, %v930, 0
    %v943 = vsel %vm938, %v931, 0
    %v946 = vsel %vm938, %v932, 0
    %v949 = vsel %vm938, %v933, 0
    %951 = vmatpush.msra.mxu0 0.0
    %952 = vmatpush.msra.mxu0 0.0
    %953 = vmatpush.msra.mxu0 0.0
    %954 = vmatpush.msra.mxu0 %v940
    %955 = vmatpush.msra.mxu0 %v926
    %956 = vmatpush.msra.mxu0 %v922
    %957 = vmatpush.msra.mxu0 %v918
    %958 = vmatpush.msra.mxu0 %v914
    %959 = vmatpush.msra.mxu0 %v910
    %960 = vmatpush.msra.mxu0 %v906
    %961 = vmatpush.msra.mxu0 %v902
    %962 = vmatpush.msra.mxu0 %v898
    %963 = vmatpush.msra.mxu0 %v894
    %964 = vmatpush.msra.mxu0 %v890
    %965 = vmatpush.msra.mxu0 %v886
    %966 = vmatpush.msra.mxu0 %v882
    %967 = vmatmul.f32.gmra.mxu0 %v936
    %v968 = vpop.f32.mrf.mxu0
    %v969 = vadd.f32 0.0, %v968
    %970 = vdwg.mxu0
    %971 = vmatpush.msra.mxu0 0.0
    %972 = vmatpush.msra.mxu0 0.0
    %973 = vmatpush.msra.mxu0 0.0
    %974 = vmatpush.msra.mxu0 %v943
    %975 = vmatpush.msra.mxu0 %v927
    %976 = vmatpush.msra.mxu0 %v923
    %977 = vmatpush.msra.mxu0 %v919
    %978 = vmatpush.msra.mxu0 %v915
    %979 = vmatpush.msra.mxu0 %v911
    %980 = vmatpush.msra.mxu0 %v907
    %981 = vmatpush.msra.mxu0 %v903
    %982 = vmatpush.msra.mxu0 %v899
    %983 = vmatpush.msra.mxu0 %v895
    %984 = vmatpush.msra.mxu0 %v891
    %985 = vmatpush.msra.mxu0 %v887
    %986 = vmatpush.msra.mxu0 %v883
    %987 = vmatmul.f32.gmra.mxu0 %v936
    %v988 = vpop.f32.mrf.mxu0
    %v989 = vadd.f32 0.0, %v988
    %990 = vdwg.mxu0
    %991 = vmatpush.msra.mxu0 0.0
    %992 = vmatpush.msra.mxu0 0.0
    %993 = vmatpush.msra.mxu0 0.0
    %994 = vmatpush.msra.mxu0 %v946
    %995 = vmatpush.msra.mxu0 %v928
    %996 = vmatpush.msra.mxu0 %v924
    %997 = vmatpush.msra.mxu0 %v920
    %998 = vmatpush.msra.mxu0 %v916
    %999 = vmatpush.msra.mxu0 %v912
    %1000 = vmatpush.msra.mxu0 %v908
    %1001 = vmatpush.msra.mxu0 %v904
    %1002 = vmatpush.msra.mxu0 %v900
    %1003 = vmatpush.msra.mxu0 %v896
    %1004 = vmatpush.msra.mxu0 %v892
    %1005 = vmatpush.msra.mxu0 %v888
    %1006 = vmatpush.msra.mxu0 %v884
    %1007 = vmatmul.f32.gmra.mxu0 %v936
    %v1008 = vpop.f32.mrf.mxu0
    %v1009 = vadd.f32 0.0, %v1008
    %1010 = vdwg.mxu0
    %1011 = vmatpush.msra.mxu0 0.0
    %1012 = vmatpush.msra.mxu0 0.0
    %1013 = vmatpush.msra.mxu0 0.0
    %1014 = vmatpush.msra.mxu0 %v949
    %1015 = vmatpush.msra.mxu0 %v929
    %1016 = vmatpush.msra.mxu0 %v925
    %1017 = vmatpush.msra.mxu0 %v921
    %1018 = vmatpush.msra.mxu0 %v917
    %1019 = vmatpush.msra.mxu0 %v913
    %1020 = vmatpush.msra.mxu0 %v909
    %1021 = vmatpush.msra.mxu0 %v905
    %1022 = vmatpush.msra.mxu0 %v901
    %1023 = vmatpush.msra.mxu0 %v897
    %1024 = vmatpush.msra.mxu0 %v893
    %1025 = vmatpush.msra.mxu0 %v889
    %1026 = vmatpush.msra.mxu0 %v885
    %1027 = vmatmul.f32.gmra.mxu0 %v936
    %v1028 = vpop.f32.mrf.mxu0
    %v1029 = vadd.f32 0.0, %v1028
    %1030 = vdwg.mxu0
    %v1031 = vmax.f32 %v969, 0.0
    %v1032 = vmax.f32 %v989, 0.0
    %v1033 = vmax.f32 %v1009, 0.0
    %v1034 = vmax.f32 %v1029, 0.0
    %1035 = vst [vmem:[#allocation3 + $0x10] sm:$0xf] 0.0
    %v1040 = vrot.slane %v1032, 4
    %v1041 = vrot.slane %v1034, 4
    %v1042 = vsel %vm938, %v1031, %v1040
    %v1043 = vsel %vm938, %v1033, %v1041
    %1046 = vst [vmem:[#allocation3] sm:$0xff] %v1042
    %1047 = vst [vmem:[#allocation3 + $0x8] sm:$0xff] %v1043
    %v1048 = vld [vmem:[#allocation3] sm:$0xff]
    %v1049 = vld [vmem:[#allocation3 + $0x8] sm:$0xff]
    %v1050 = vld [vmem:[#allocation3 + $0x10] sm:$0xf]
    %1053 = vst [vmem:[#allocation1] ss:$2 sm:$0xff] %v1048
    %s1054 = scalar_lea.vmem [#allocation1], 16
    %1055 = vst [vmem:[%s1054] ss:$2 sm:$0xff] %v1049
    %v1056 = vld.sshfl [vmem:[#allocation1] sm:$0xff pattern:$0x75316420]
    %v1057 = vld.sshfl [vmem:[#allocation1 + $0x8] sm:$0xff pattern:$0x75316420]
    %v1058 = vld.sshfl [vmem:[#allocation1 + $0x10] sm:$0xff pattern:$0x75316420]
    %v1059 = vld.sshfl [vmem:[#allocation1 + $0x18] sm:$0xff pattern:$0x75316420]
    %1064 = vst [vmem:[#allocation2] sm:$0xf] %v1056
    %1065 = vst [vmem:[#allocation2 + $0x8] sm:$0xf] %v1057
    %1066 = vst [vmem:[#allocation2 + $0x10] sm:$0xf] %v1058
    %1067 = vst [vmem:[#allocation2 + $0x18] sm:$0xf] %v1059
    %s1069 = scalar_lea.vmem [#allocation1], 1
    %1070 = vst [vmem:[%s1069] ss:$2 sm:$0xff] %v1048
    %s1071 = scalar_lea.vmem [#allocation1], 17
    %1072 = vst [vmem:[%s1071] ss:$2 sm:$0xff] %v1049
    %s1073 = scalar_lea.vmem [#allocation1], 33
    %1074 = vst [vmem:[%s1073] ss:$2 sm:$0xff] %v1050
    %v1075 = vld.sshfl [vmem:[#allocation1] sm:$0xff pattern:$0x75316420]
    %v1076 = vld.sshfl [vmem:[#allocation1 + $0x8] sm:$0xff pattern:$0x75316420]
    %v1077 = vld.sshfl [vmem:[#allocation1 + $0x10] sm:$0xff pattern:$0x75316420]
    %v1078 = vld.sshfl [vmem:[#allocation1 + $0x18] sm:$0xff pattern:$0x75316420]
    %v1079 = vld.sshfl [vmem:[#allocation1 + $0x20] sm:$0xff pattern:$0x75316420]
    %1080 = vrot.lane.b32.xlu0 %v1075, 127
    %v1081 = vpop.permute.xlu0 %1080
    %1082 = vrot.lane.b32.xlu0 %v1076, 127
    %v1083 = vpop.permute.xlu0 %1082
    %1084 = vrot.lane.b32.xlu0 %v1077, 127
    %v1085 = vpop.permute.xlu0 %1084
    %1086 = vrot.lane.b32.xlu0 %v1078, 127
    %v1087 = vpop.permute.xlu0 %1086
    %1088 = vrot.lane.b32.xlu0 %v1079, 127
    %v1089 = vpop.permute.xlu0 %1088
    %v1090 = vsel %vm98, %v1081, %v1083
    %v1091 = vsel %vm98, %v1083, %v1085
    %v1092 = vsel %vm98, %v1085, %v1087
    %v1093 = vsel %vm98, %v1087, %v1089
    %1098 = vst [vmem:[#allocation2] sm:$0xf0] %v1090
    %1099 = vst [vmem:[#allocation2 + $0x8] sm:$0xf0] %v1091
    %1100 = vst [vmem:[#allocation2 + $0x10] sm:$0xf0] %v1092
    %1101 = vst [vmem:[#allocation2 + $0x18] sm:$0xf0] %v1093
    %1102 = vst [vmem:[#allocation1] ss:$2 sm:$0xff] %v1048
    %s1103 = scalar_lea.vmem [#allocation1], 16
    %1104 = vst [vmem:[%s1103] ss:$2 sm:$0xff] %v1049
    %s1105 = scalar_lea.vmem [#allocation1], 32
    %1106 = vst [vmem:[%s1105] ss:$2 sm:$0xff] %v1050
    %v1107 = vld.sshfl [vmem:[#allocation1] sm:$0xff pattern:$0x75316420]
    %v1108 = vld.sshfl [vmem:[#allocation1 + $0x8] sm:$0xff pattern:$0x75316420]
    %v1109 = vld.sshfl [vmem:[#allocation1 + $0x10] sm:$0xff pattern:$0x75316420]
    %v1110 = vld.sshfl [vmem:[#allocation1 + $0x18] sm:$0xff pattern:$0x75316420]
    %v1111 = vld.sshfl [vmem:[#allocation1 + $0x20] sm:$0xff pattern:$0x75316420]
    %1112 = vrot.lane.b32.xlu0 %v1107, 126
    %v1113 = vpop.permute.xlu0 %1112
    %1114 = vrot.lane.b32.xlu0 %v1108, 126
    %v1115 = vpop.permute.xlu0 %1114
    %1116 = vrot.lane.b32.xlu0 %v1109, 126
    %v1117 = vpop.permute.xlu0 %1116
    %1118 = vrot.lane.b32.xlu0 %v1110, 126
    %v1119 = vpop.permute.xlu0 %1118
    %1120 = vrot.lane.b32.xlu0 %v1111, 126
    %v1121 = vpop.permute.xlu0 %1120
    %v1122 = vsel %vm131, %v1113, %v1115
    %v1123 = vsel %vm131, %v1115, %v1117
    %v1124 = vsel %vm131, %v1117, %v1119
    %v1125 = vsel %vm131, %v1119, %v1121
    %1130 = vst [vmem:[#allocation2 + $0x20] sm:$0xf] %v1122
    %1131 = vst [vmem:[#allocation2 + $0x28] sm:$0xf] %v1123
    %1132 = vst [vmem:[#allocation2 + $0x30] sm:$0xf] %v1124
    %1133 = vst [vmem:[#allocation2 + $0x38] sm:$0xf] %v1125
    %s1134 = scalar_lea.vmem [#allocation1], 1
    %1135 = vst [vmem:[%s1134] ss:$2 sm:$0xff] %v1048
    %s1136 = scalar_lea.vmem [#allocation1], 17
    %1137 = vst [vmem:[%s1136] ss:$2 sm:$0xff] %v1049
    %s1138 = scalar_lea.vmem [#allocation1], 33
    %1139 = vst [vmem:[%s1138] ss:$2 sm:$0xff] %v1050
    %v1140 = vld.sshfl [vmem:[#allocation1] sm:$0xff pattern:$0x75316420]
    %v1141 = vld.sshfl [vmem:[#allocation1 + $0x8] sm:$0xff pattern:$0x75316420]
    %v1142 = vld.sshfl [vmem:[#allocation1 + $0x10] sm:$0xff pattern:$0x75316420]
    %v1143 = vld.sshfl [vmem:[#allocation1 + $0x18] sm:$0xff pattern:$0x75316420]
    %v1144 = vld.sshfl [vmem:[#allocation1 + $0x20] sm:$0xff pattern:$0x75316420]
    %1145 = vrot.lane.b32.xlu0 %v1140, 125
    %v1146 = vpop.permute.xlu0 %1145
    %1147 = vrot.lane.b32.xlu0 %v1141, 125
    %v1148 = vpop.permute.xlu0 %1147
    %1149 = vrot.lane.b32.xlu0 %v1142, 125
    %v1150 = vpop.permute.xlu0 %1149
    %1151 = vrot.lane.b32.xlu0 %v1143, 125
    %v1152 = vpop.permute.xlu0 %1151
    %1153 = vrot.lane.b32.xlu0 %v1144, 125
    %v1154 = vpop.permute.xlu0 %1153
    %v1155 = vsel %vm165, %v1146, %v1148
    %v1156 = vsel %vm165, %v1148, %v1150
    %v1157 = vsel %vm165, %v1150, %v1152
    %v1158 = vsel %vm165, %v1152, %v1154
    %1163 = vst [vmem:[#allocation2 + $0x20] sm:$0xf0] %v1155
    %1164 = vst [vmem:[#allocation2 + $0x28] sm:$0xf0] %v1156
    %1165 = vst [vmem:[#allocation2 + $0x30] sm:$0xf0] %v1157
    %1166 = vst [vmem:[#allocation2 + $0x38] sm:$0xf0] %v1158
    %1167 = vst [vmem:[#allocation1] ss:$2 sm:$0xff] %v1048
    %s1168 = scalar_lea.vmem [#allocation1], 16
    %1169 = vst [vmem:[%s1168] ss:$2 sm:$0xff] %v1049
    %s1170 = scalar_lea.vmem [#allocation1], 32
    %1171 = vst [vmem:[%s1170] ss:$2 sm:$0xff] %v1050
    %v1172 = vld.sshfl [vmem:[#allocation1] sm:$0xff pattern:$0x75316420]
    %v1173 = vld.sshfl [vmem:[#allocation1 + $0x8] sm:$0xff pattern:$0x75316420]
    %v1174 = vld.sshfl [vmem:[#allocation1 + $0x10] sm:$0xff pattern:$0x75316420]
    %v1175 = vld.sshfl [vmem:[#allocation1 + $0x18] sm:$0xff pattern:$0x75316420]
    %v1176 = vld.sshfl [vmem:[#allocation1 + $0x20] sm:$0xff pattern:$0x75316420]
    %1177 = vrot.lane.b32.xlu0 %v1172, 124
    %v1178 = vpop.permute.xlu0 %1177
    %1179 = vrot.lane.b32.xlu0 %v1173, 124
    %v1180 = vpop.permute.xlu0 %1179
    %1181 = vrot.lane.b32.xlu0 %v1174, 124
    %v1182 = vpop.permute.xlu0 %1181
    %1183 = vrot.lane.b32.xlu0 %v1175, 124
    %v1184 = vpop.permute.xlu0 %1183
    %1185 = vrot.lane.b32.xlu0 %v1176, 124
    %v1186 = vpop.permute.xlu0 %1185
    %v1187 = vsel %vm198, %v1178, %v1180
    %v1188 = vsel %vm198, %v1180, %v1182
    %v1189 = vsel %vm198, %v1182, %v1184
    %v1190 = vsel %vm198, %v1184, %v1186
    %1195 = vst [vmem:[#allocation2 + $0x40] sm:$0xf] %v1187
    %1196 = vst [vmem:[#allocation2 + $0x48] sm:$0xf] %v1188
    %1197 = vst [vmem:[#allocation2 + $0x50] sm:$0xf] %v1189
    %1198 = vst [vmem:[#allocation2 + $0x58] sm:$0xf] %v1190
    %s1199 = scalar_lea.vmem [#allocation1], 1
    %1200 = vst [vmem:[%s1199] ss:$2 sm:$0xff] %v1048
    %s1201 = scalar_lea.vmem [#allocation1], 17
    %1202 = vst [vmem:[%s1201] ss:$2 sm:$0xff] %v1049
    %s1203 = scalar_lea.vmem [#allocation1], 33
    %1204 = vst [vmem:[%s1203] ss:$2 sm:$0xff] %v1050
    %v1205 = vld.sshfl [vmem:[#allocation1] sm:$0xff pattern:$0x75316420]
    %v1206 = vld.sshfl [vmem:[#allocation1 + $0x8] sm:$0xff pattern:$0x75316420]
    %v1207 = vld.sshfl [vmem:[#allocation1 + $0x10] sm:$0xff pattern:$0x75316420]
    %v1208 = vld.sshfl [vmem:[#allocation1 + $0x18] sm:$0xff pattern:$0x75316420]
    %v1209 = vld.sshfl [vmem:[#allocation1 + $0x20] sm:$0xff pattern:$0x75316420]
    %1210 = vrot.lane.b32.xlu0 %v1205, 112
    %v1211 = vpop.permute.xlu0 %1210
    %1212 = vrot.lane.b32.xlu0 %v1206, 112
    %v1213 = vpop.permute.xlu0 %1212
    %1214 = vrot.lane.b32.xlu0 %v1207, 112
    %v1215 = vpop.permute.xlu0 %1214
    %1216 = vrot.lane.b32.xlu0 %v1208, 112
    %v1217 = vpop.permute.xlu0 %1216
    %1218 = vrot.lane.b32.xlu0 %v1209, 112
    %v1219 = vpop.permute.xlu0 %1218
    %v1220 = vsel %vm232, %v1211, %v1213
    %v1221 = vsel %vm232, %v1213, %v1215
    %v1222 = vsel %vm232, %v1215, %v1217
    %v1223 = vsel %vm232, %v1217, %v1219
    %1228 = vst [vmem:[#allocation2 + $0x40] sm:$0xf0] %v1220
    %1229 = vst [vmem:[#allocation2 + $0x48] sm:$0xf0] %v1221
    %1230 = vst [vmem:[#allocation2 + $0x50] sm:$0xf0] %v1222
    %1231 = vst [vmem:[#allocation2 + $0x58] sm:$0xf0] %v1223
    %1232 = vst [vmem:[#allocation1] ss:$2 sm:$0xff] %v1048
    %s1233 = scalar_lea.vmem [#allocation1], 16
    %1234 = vst [vmem:[%s1233] ss:$2 sm:$0xff] %v1049
    %s1235 = scalar_lea.vmem [#allocation1], 32
    %1236 = vst [vmem:[%s1235] ss:$2 sm:$0xff] %v1050
    %v1237 = vld.sshfl [vmem:[#allocation1] sm:$0xff pattern:$0x75316420]
    %v1238 = vld.sshfl [vmem:[#allocation1 + $0x8] sm:$0xff pattern:$0x75316420]
    %v1239 = vld.sshfl [vmem:[#allocation1 + $0x10] sm:$0xff pattern:$0x75316420]
    %v1240 = vld.sshfl [vmem:[#allocation1 + $0x18] sm:$0xff pattern:$0x75316420]
    %v1241 = vld.sshfl [vmem:[#allocation1 + $0x20] sm:$0xff pattern:$0x75316420]
    %1242 = vrot.lane.b32.xlu0 %v1237, 111
    %v1243 = vpop.permute.xlu0 %1242
    %1244 = vrot.lane.b32.xlu0 %v1238, 111
    %v1245 = vpop.permute.xlu0 %1244
    %1246 = vrot.lane.b32.xlu0 %v1239, 111
    %v1247 = vpop.permute.xlu0 %1246
    %1248 = vrot.lane.b32.xlu0 %v1240, 111
    %v1249 = vpop.permute.xlu0 %1248
    %1250 = vrot.lane.b32.xlu0 %v1241, 111
    %v1251 = vpop.permute.xlu0 %1250
    %v1252 = vsel %vm265, %v1243, %v1245
    %v1253 = vsel %vm265, %v1245, %v1247
    %v1254 = vsel %vm265, %v1247, %v1249
    %v1255 = vsel %vm265, %v1249, %v1251
    %1260 = vst [vmem:[#allocation2 + $0x60] sm:$0xf] %v1252
    %1261 = vst [vmem:[#allocation2 + $0x68] sm:$0xf] %v1253
    %1262 = vst [vmem:[#allocation2 + $0x70] sm:$0xf] %v1254
    %1263 = vst [vmem:[#allocation2 + $0x78] sm:$0xf] %v1255
    %s1264 = scalar_lea.vmem [#allocation1], 1
    %1265 = vst [vmem:[%s1264] ss:$2 sm:$0xff] %v1048
    %s1266 = scalar_lea.vmem [#allocation1], 17
    %1267 = vst [vmem:[%s1266] ss:$2 sm:$0xff] %v1049
    %s1268 = scalar_lea.vmem [#allocation1], 33
    %1269 = vst [vmem:[%s1268] ss:$2 sm:$0xff] %v1050
    %v1270 = vld.sshfl [vmem:[#allocation1] sm:$0xff pattern:$0x75316420]
    %v1271 = vld.sshfl [vmem:[#allocation1 + $0x8] sm:$0xff pattern:$0x75316420]
    %v1272 = vld.sshfl [vmem:[#allocation1 + $0x10] sm:$0xff pattern:$0x75316420]
    %v1273 = vld.sshfl [vmem:[#allocation1 + $0x18] sm:$0xff pattern:$0x75316420]
    %v1274 = vld.sshfl [vmem:[#allocation1 + $0x20] sm:$0xff pattern:$0x75316420]
    %1275 = vrot.lane.b32.xlu0 %v1270, 110
    %v1276 = vpop.permute.xlu0 %1275
    %1277 = vrot.lane.b32.xlu0 %v1271, 110
    %v1278 = vpop.permute.xlu0 %1277
    %1279 = vrot.lane.b32.xlu0 %v1272, 110
    %v1280 = vpop.permute.xlu0 %1279
    %1281 = vrot.lane.b32.xlu0 %v1273, 110
    %v1282 = vpop.permute.xlu0 %1281
    %1283 = vrot.lane.b32.xlu0 %v1274, 110
    %v1284 = vpop.permute.xlu0 %1283
    %v1285 = vsel %vm299, %v1276, %v1278
    %v1286 = vsel %vm299, %v1278, %v1280
    %v1287 = vsel %vm299, %v1280, %v1282
    %v1288 = vsel %vm299, %v1282, %v1284
    %1293 = vst [vmem:[#allocation2 + $0x60] sm:$0xf0] %v1285
    %1294 = vst [vmem:[#allocation2 + $0x68] sm:$0xf0] %v1286
    %1295 = vst [vmem:[#allocation2 + $0x70] sm:$0xf0] %v1287
    %1296 = vst [vmem:[#allocation2 + $0x78] sm:$0xf0] %v1288
    %1297 = vst [vmem:[#allocation1] ss:$2 sm:$0xff] %v1048
    %s1298 = scalar_lea.vmem [#allocation1], 16
    %1299 = vst [vmem:[%s1298] ss:$2 sm:$0xff] %v1049
    %s1300 = scalar_lea.vmem [#allocation1], 32
    %1301 = vst [vmem:[%s1300] ss:$2 sm:$0xff] %v1050
    %v1302 = vld.sshfl [vmem:[#allocation1] sm:$0xff pattern:$0x75316420]
    %v1303 = vld.sshfl [vmem:[#allocation1 + $0x8] sm:$0xff pattern:$0x75316420]
    %v1304 = vld.sshfl [vmem:[#allocation1 + $0x10] sm:$0xff pattern:$0x75316420]
    %v1305 = vld.sshfl [vmem:[#allocation1 + $0x18] sm:$0xff pattern:$0x75316420]
    %v1306 = vld.sshfl [vmem:[#allocation1 + $0x20] sm:$0xff pattern:$0x75316420]
    %1307 = vrot.lane.b32.xlu0 %v1302, 109
    %v1308 = vpop.permute.xlu0 %1307
    %1309 = vrot.lane.b32.xlu0 %v1303, 109
    %v1310 = vpop.permute.xlu0 %1309
    %1311 = vrot.lane.b32.xlu0 %v1304, 109
    %v1312 = vpop.permute.xlu0 %1311
    %1313 = vrot.lane.b32.xlu0 %v1305, 109
    %v1314 = vpop.permute.xlu0 %1313
    %1315 = vrot.lane.b32.xlu0 %v1306, 109
    %v1316 = vpop.permute.xlu0 %1315
    %v1317 = vsel %vm332, %v1308, %v1310
    %v1318 = vsel %vm332, %v1310, %v1312
    %v1319 = vsel %vm332, %v1312, %v1314
    %v1320 = vsel %vm332, %v1314, %v1316
    %1325 = vst [vmem:[#allocation2 + $0x80] sm:$0xf] %v1317
    %1326 = vst [vmem:[#allocation2 + $0x88] sm:$0xf] %v1318
    %1327 = vst [vmem:[#allocation2 + $0x90] sm:$0xf] %v1319
    %1328 = vst [vmem:[#allocation2 + $0x98] sm:$0xf] %v1320
    %s1329 = scalar_lea.vmem [#allocation1], 1
    %1330 = vst [vmem:[%s1329] ss:$2 sm:$0xff] %v1048
    %s1331 = scalar_lea.vmem [#allocation1], 17
    %1332 = vst [vmem:[%s1331] ss:$2 sm:$0xff] %v1049
    %s1333 = scalar_lea.vmem [#allocation1], 33
    %1334 = vst [vmem:[%s1333] ss:$2 sm:$0xff] %v1050
    %v1335 = vld.sshfl [vmem:[#allocation1] sm:$0xff pattern:$0x75316420]
    %v1336 = vld.sshfl [vmem:[#allocation1 + $0x8] sm:$0xff pattern:$0x75316420]
    %v1337 = vld.sshfl [vmem:[#allocation1 + $0x10] sm:$0xff pattern:$0x75316420]
    %v1338 = vld.sshfl [vmem:[#allocation1 + $0x18] sm:$0xff pattern:$0x75316420]
    %v1339 = vld.sshfl [vmem:[#allocation1 + $0x20] sm:$0xff pattern:$0x75316420]
    %1340 = vrot.lane.b32.xlu0 %v1335, 108
    %v1341 = vpop.permute.xlu0 %1340
    %1342 = vrot.lane.b32.xlu0 %v1336, 108
    %v1343 = vpop.permute.xlu0 %1342
    %1344 = vrot.lane.b32.xlu0 %v1337, 108
    %v1345 = vpop.permute.xlu0 %1344
    %1346 = vrot.lane.b32.xlu0 %v1338, 108
    %v1347 = vpop.permute.xlu0 %1346
    %1348 = vrot.lane.b32.xlu0 %v1339, 108
    %v1349 = vpop.permute.xlu0 %1348
    %v1350 = vsel %vm366, %v1341, %v1343
    %v1351 = vsel %vm366, %v1343, %v1345
    %v1352 = vsel %vm366, %v1345, %v1347
    %v1353 = vsel %vm366, %v1347, %v1349
    %1358 = vst [vmem:[#allocation2 + $0x80] sm:$0xf0] %v1350
    %1359 = vst [vmem:[#allocation2 + $0x88] sm:$0xf0] %v1351
    %1360 = vst [vmem:[#allocation2 + $0x90] sm:$0xf0] %v1352
    %1361 = vst [vmem:[#allocation2 + $0x98] sm:$0xf0] %v1353
    %1362 = vst [vmem:[#allocation1] ss:$2 sm:$0xff] %v1048
    %s1363 = scalar_lea.vmem [#allocation1], 16
    %1364 = vst [vmem:[%s1363] ss:$2 sm:$0xff] %v1049
    %s1365 = scalar_lea.vmem [#allocation1], 32
    %1366 = vst [vmem:[%s1365] ss:$2 sm:$0xff] %v1050
    %v1367 = vld.sshfl [vmem:[#allocation1] sm:$0xff pattern:$0x75316420]
    %v1368 = vld.sshfl [vmem:[#allocation1 + $0x8] sm:$0xff pattern:$0x75316420]
    %v1369 = vld.sshfl [vmem:[#allocation1 + $0x10] sm:$0xff pattern:$0x75316420]
    %v1370 = vld.sshfl [vmem:[#allocation1 + $0x18] sm:$0xff pattern:$0x75316420]
    %v1371 = vld.sshfl [vmem:[#allocation1 + $0x20] sm:$0xff pattern:$0x75316420]
    %1372 = vrot.lane.b32.xlu0 %v1367, 96
    %v1373 = vpop.permute.xlu0 %1372
    %1374 = vrot.lane.b32.xlu0 %v1368, 96
    %v1375 = vpop.permute.xlu0 %1374
    %1376 = vrot.lane.b32.xlu0 %v1369, 96
    %v1377 = vpop.permute.xlu0 %1376
    %1378 = vrot.lane.b32.xlu0 %v1370, 96
    %v1379 = vpop.permute.xlu0 %1378
    %1380 = vrot.lane.b32.xlu0 %v1371, 96
    %v1381 = vpop.permute.xlu0 %1380
    %v1382 = vsel %vm399, %v1373, %v1375
    %v1383 = vsel %vm399, %v1375, %v1377
    %v1384 = vsel %vm399, %v1377, %v1379
    %v1385 = vsel %vm399, %v1379, %v1381
    %1390 = vst [vmem:[#allocation2 + $0xa0] sm:$0xf] %v1382
    %1391 = vst [vmem:[#allocation2 + $0xa8] sm:$0xf] %v1383
    %1392 = vst [vmem:[#allocation2 + $0xb0] sm:$0xf] %v1384
    %1393 = vst [vmem:[#allocation2 + $0xb8] sm:$0xf] %v1385
    %s1394 = scalar_lea.vmem [#allocation1], 1
    %1395 = vst [vmem:[%s1394] ss:$2 sm:$0xff] %v1048
    %s1396 = scalar_lea.vmem [#allocation1], 17
    %1397 = vst [vmem:[%s1396] ss:$2 sm:$0xff] %v1049
    %s1398 = scalar_lea.vmem [#allocation1], 33
    %1399 = vst [vmem:[%s1398] ss:$2 sm:$0xff] %v1050
    %v1400 = vld.sshfl [vmem:[#allocation1] sm:$0xff pattern:$0x75316420]
    %v1401 = vld.sshfl [vmem:[#allocation1 + $0x8] sm:$0xff pattern:$0x75316420]
    %v1402 = vld.sshfl [vmem:[#allocation1 + $0x10] sm:$0xff pattern:$0x75316420]
    %v1403 = vld.sshfl [vmem:[#allocation1 + $0x18] sm:$0xff pattern:$0x75316420]
    %v1404 = vld.sshfl [vmem:[#allocation1 + $0x20] sm:$0xff pattern:$0x75316420]
    %1405 = vrot.lane.b32.xlu0 %v1400, 95
    %v1406 = vpop.permute.xlu0 %1405
    %1407 = vrot.lane.b32.xlu0 %v1401, 95
    %v1408 = vpop.permute.xlu0 %1407
    %1409 = vrot.lane.b32.xlu0 %v1402, 95
    %v1410 = vpop.permute.xlu0 %1409
    %1411 = vrot.lane.b32.xlu0 %v1403, 95
    %v1412 = vpop.permute.xlu0 %1411
    %1413 = vrot.lane.b32.xlu0 %v1404, 95
    %v1414 = vpop.permute.xlu0 %1413
    %v1415 = vsel %vm433, %v1406, %v1408
    %v1416 = vsel %vm433, %v1408, %v1410
    %v1417 = vsel %vm433, %v1410, %v1412
    %v1418 = vsel %vm433, %v1412, %v1414
    %1423 = vst [vmem:[#allocation2 + $0xa0] sm:$0xf0] %v1415
    %1424 = vst [vmem:[#allocation2 + $0xa8] sm:$0xf0] %v1416
    %1425 = vst [vmem:[#allocation2 + $0xb0] sm:$0xf0] %v1417
    %1426 = vst [vmem:[#allocation2 + $0xb8] sm:$0xf0] %v1418
    %1427 = vst [vmem:[#allocation1] ss:$2 sm:$0xff] %v1048
    %s1428 = scalar_lea.vmem [#allocation1], 16
    %1429 = vst [vmem:[%s1428] ss:$2 sm:$0xff] %v1049
    %s1430 = scalar_lea.vmem [#allocation1], 32
    %1431 = vst [vmem:[%s1430] ss:$2 sm:$0xff] %v1050
    %v1432 = vld.sshfl [vmem:[#allocation1] sm:$0xff pattern:$0x75316420]
    %v1433 = vld.sshfl [vmem:[#allocation1 + $0x8] sm:$0xff pattern:$0x75316420]
    %v1434 = vld.sshfl [vmem:[#allocation1 + $0x10] sm:$0xff pattern:$0x75316420]
    %v1435 = vld.sshfl [vmem:[#allocation1 + $0x18] sm:$0xff pattern:$0x75316420]
    %v1436 = vld.sshfl [vmem:[#allocation1 + $0x20] sm:$0xff pattern:$0x75316420]
    %1437 = vrot.lane.b32.xlu0 %v1432, 94
    %v1438 = vpop.permute.xlu0 %1437
    %1439 = vrot.lane.b32.xlu0 %v1433, 94
    %v1440 = vpop.permute.xlu0 %1439
    %1441 = vrot.lane.b32.xlu0 %v1434, 94
    %v1442 = vpop.permute.xlu0 %1441
    %1443 = vrot.lane.b32.xlu0 %v1435, 94
    %v1444 = vpop.permute.xlu0 %1443
    %1445 = vrot.lane.b32.xlu0 %v1436, 94
    %v1446 = vpop.permute.xlu0 %1445
    %v1447 = vsel %vm466, %v1438, %v1440
    %v1448 = vsel %vm466, %v1440, %v1442
    %v1449 = vsel %vm466, %v1442, %v1444
    %v1450 = vsel %vm466, %v1444, %v1446
    %1455 = vst [vmem:[#allocation2 + $0xc0] sm:$0xf] %v1447
    %1456 = vst [vmem:[#allocation2 + $0xc8] sm:$0xf] %v1448
    %1457 = vst [vmem:[#allocation2 + $0xd0] sm:$0xf] %v1449
    %1458 = vst [vmem:[#allocation2 + $0xd8] sm:$0xf] %v1450
    %s1459 = scalar_lea.vmem [#allocation1], 1
    %1460 = vst [vmem:[%s1459] ss:$2 sm:$0xff] %v1048
    %s1461 = scalar_lea.vmem [#allocation1], 17
    %1462 = vst [vmem:[%s1461] ss:$2 sm:$0xff] %v1049
    %s1463 = scalar_lea.vmem [#allocation1], 33
    %1464 = vst [vmem:[%s1463] ss:$2 sm:$0xff] %v1050
    %v1465 = vld.sshfl [vmem:[#allocation1] sm:$0xff pattern:$0x75316420]
    %v1466 = vld.sshfl [vmem:[#allocation1 + $0x8] sm:$0xff pattern:$0x75316420]
    %v1467 = vld.sshfl [vmem:[#allocation1 + $0x10] sm:$0xff pattern:$0x75316420]
    %v1468 = vld.sshfl [vmem:[#allocation1 + $0x18] sm:$0xff pattern:$0x75316420]
    %v1469 = vld.sshfl [vmem:[#allocation1 + $0x20] sm:$0xff pattern:$0x75316420]
    %1470 = vrot.lane.b32.xlu0 %v1465, 93
    %v1471 = vpop.permute.xlu0 %1470
    %1472 = vrot.lane.b32.xlu0 %v1466, 93
    %v1473 = vpop.permute.xlu0 %1472
    %1474 = vrot.lane.b32.xlu0 %v1467, 93
    %v1475 = vpop.permute.xlu0 %1474
    %1476 = vrot.lane.b32.xlu0 %v1468, 93
    %v1477 = vpop.permute.xlu0 %1476
    %1478 = vrot.lane.b32.xlu0 %v1469, 93
    %v1479 = vpop.permute.xlu0 %1478
    %v1480 = vsel %vm500, %v1471, %v1473
    %v1481 = vsel %vm500, %v1473, %v1475
    %v1482 = vsel %vm500, %v1475, %v1477
    %v1483 = vsel %vm500, %v1477, %v1479
    %1488 = vst [vmem:[#allocation2 + $0xc0] sm:$0xf0] %v1480
    %1489 = vst [vmem:[#allocation2 + $0xc8] sm:$0xf0] %v1481
    %1490 = vst [vmem:[#allocation2 + $0xd0] sm:$0xf0] %v1482
    %1491 = vst [vmem:[#allocation2 + $0xd8] sm:$0xf0] %v1483
    %1492 = vst [vmem:[#allocation1] ss:$2 sm:$0xff] %v1048
    %s1493 = scalar_lea.vmem [#allocation1], 16
    %1494 = vst [vmem:[%s1493] ss:$2 sm:$0xff] %v1049
    %s1495 = scalar_lea.vmem [#allocation1], 32
    %1496 = vst [vmem:[%s1495] ss:$2 sm:$0xff] %v1050
    %v1497 = vld.sshfl [vmem:[#allocation1] sm:$0xff pattern:$0x75316420]
    %v1498 = vld.sshfl [vmem:[#allocation1 + $0x8] sm:$0xff pattern:$0x75316420]
    %v1499 = vld.sshfl [vmem:[#allocation1 + $0x10] sm:$0xff pattern:$0x75316420]
    %v1500 = vld.sshfl [vmem:[#allocation1 + $0x18] sm:$0xff pattern:$0x75316420]
    %v1501 = vld.sshfl [vmem:[#allocation1 + $0x20] sm:$0xff pattern:$0x75316420]
    %1502 = vrot.lane.b32.xlu0 %v1497, 92
    %v1503 = vpop.permute.xlu0 %1502
    %1504 = vrot.lane.b32.xlu0 %v1498, 92
    %v1505 = vpop.permute.xlu0 %1504
    %1506 = vrot.lane.b32.xlu0 %v1499, 92
    %v1507 = vpop.permute.xlu0 %1506
    %1508 = vrot.lane.b32.xlu0 %v1500, 92
    %v1509 = vpop.permute.xlu0 %1508
    %1510 = vrot.lane.b32.xlu0 %v1501, 92
    %v1511 = vpop.permute.xlu0 %1510
    %v1512 = vsel %vm533, %v1503, %v1505
    %v1513 = vsel %vm533, %v1505, %v1507
    %v1514 = vsel %vm533, %v1507, %v1509
    %v1515 = vsel %vm533, %v1509, %v1511
    %1520 = vst [vmem:[#allocation2 + $0xe0] sm:$0xf] %v1512
    %1521 = vst [vmem:[#allocation2 + $0xe8] sm:$0xf] %v1513
    %1522 = vst [vmem:[#allocation2 + $0xf0] sm:$0xf] %v1514
    %1523 = vst [vmem:[#allocation2 + $0xf8] sm:$0xf] %v1515
    %s1524 = scalar_lea.vmem [#allocation1], 1
    %1525 = vst [vmem:[%s1524] ss:$2 sm:$0xff] %v1048
    %s1526 = scalar_lea.vmem [#allocation1], 17
    %1527 = vst [vmem:[%s1526] ss:$2 sm:$0xff] %v1049
    %s1528 = scalar_lea.vmem [#allocation1], 33
    %1529 = vst [vmem:[%s1528] ss:$2 sm:$0xff] %v1050
    %v1530 = vld.sshfl [vmem:[#allocation1] sm:$0xff pattern:$0x75316420]
    %v1531 = vld.sshfl [vmem:[#allocation1 + $0x8] sm:$0xff pattern:$0x75316420]
    %v1532 = vld.sshfl [vmem:[#allocation1 + $0x10] sm:$0xff pattern:$0x75316420]
    %v1533 = vld.sshfl [vmem:[#allocation1 + $0x18] sm:$0xff pattern:$0x75316420]
    %v1534 = vld.sshfl [vmem:[#allocation1 + $0x20] sm:$0xff pattern:$0x75316420]
    %1535 = vrot.lane.b32.xlu0 %v1530, 80
    %v1536 = vpop.permute.xlu0 %1535
    %1537 = vrot.lane.b32.xlu0 %v1531, 80
    %v1538 = vpop.permute.xlu0 %1537
    %1539 = vrot.lane.b32.xlu0 %v1532, 80
    %v1540 = vpop.permute.xlu0 %1539
    %1541 = vrot.lane.b32.xlu0 %v1533, 80
    %v1542 = vpop.permute.xlu0 %1541
    %1543 = vrot.lane.b32.xlu0 %v1534, 80
    %v1544 = vpop.permute.xlu0 %1543
    %v1545 = vsel %vm567, %v1536, %v1538
    %v1546 = vsel %vm567, %v1538, %v1540
    %v1547 = vsel %vm567, %v1540, %v1542
    %v1548 = vsel %vm567, %v1542, %v1544
    %1553 = vst [vmem:[#allocation2 + $0xe0] sm:$0xf0] %v1545
    %1554 = vst [vmem:[#allocation2 + $0xe8] sm:$0xf0] %v1546
    %1555 = vst [vmem:[#allocation2 + $0xf0] sm:$0xf0] %v1547
    %1556 = vst [vmem:[#allocation2 + $0xf8] sm:$0xf0] %v1548
    %1557 = vst [vmem:[#allocation1] ss:$2 sm:$0xff] %v1048
    %s1558 = scalar_lea.vmem [#allocation1], 16
    %1559 = vst [vmem:[%s1558] ss:$2 sm:$0xff] %v1049
    %s1560 = scalar_lea.vmem [#allocation1], 32
    %1561 = vst [vmem:[%s1560] ss:$2 sm:$0xff] %v1050
    %v1562 = vld.sshfl [vmem:[#allocation1] sm:$0xff pattern:$0x75316420]
    %v1563 = vld.sshfl [vmem:[#allocation1 + $0x8] sm:$0xff pattern:$0x75316420]
    %v1564 = vld.sshfl [vmem:[#allocation1 + $0x10] sm:$0xff pattern:$0x75316420]
    %v1565 = vld.sshfl [vmem:[#allocation1 + $0x18] sm:$0xff pattern:$0x75316420]
    %v1566 = vld.sshfl [vmem:[#allocation1 + $0x20] sm:$0xff pattern:$0x75316420]
    %1567 = vrot.lane.b32.xlu0 %v1562, 79
    %v1568 = vpop.permute.xlu0 %1567
    %1569 = vrot.lane.b32.xlu0 %v1563, 79
    %v1570 = vpop.permute.xlu0 %1569
    %1571 = vrot.lane.b32.xlu0 %v1564, 79
    %v1572 = vpop.permute.xlu0 %1571
    %1573 = vrot.lane.b32.xlu0 %v1565, 79
    %v1574 = vpop.permute.xlu0 %1573
    %1575 = vrot.lane.b32.xlu0 %v1566, 79
    %v1576 = vpop.permute.xlu0 %1575
    %v1577 = vsel %vm600, %v1568, %v1570
    %v1578 = vsel %vm600, %v1570, %v1572
    %v1579 = vsel %vm600, %v1572, %v1574
    %v1580 = vsel %vm600, %v1574, %v1576
    %1585 = vst [vmem:[#allocation2 + $0x100] sm:$0xf] %v1577
    %1586 = vst [vmem:[#allocation2 + $0x108] sm:$0xf] %v1578
    %1587 = vst [vmem:[#allocation2 + $0x110] sm:$0xf] %v1579
    %1588 = vst [vmem:[#allocation2 + $0x118] sm:$0xf] %v1580
    %s1589 = scalar_lea.vmem [#allocation1], 1
    %1590 = vst [vmem:[%s1589] ss:$2 sm:$0xff] %v1048
    %s1591 = scalar_lea.vmem [#allocation1], 17
    %1592 = vst [vmem:[%s1591] ss:$2 sm:$0xff] %v1049
    %s1593 = scalar_lea.vmem [#allocation1], 33
    %1594 = vst [vmem:[%s1593] ss:$2 sm:$0xff] %v1050
    %v1595 = vld.sshfl [vmem:[#allocation1] sm:$0xff pattern:$0x75316420]
    %v1596 = vld.sshfl [vmem:[#allocation1 + $0x8] sm:$0xff pattern:$0x75316420]
    %v1597 = vld.sshfl [vmem:[#allocation1 + $0x10] sm:$0xff pattern:$0x75316420]
    %v1598 = vld.sshfl [vmem:[#allocation1 + $0x18] sm:$0xff pattern:$0x75316420]
    %v1599 = vld.sshfl [vmem:[#allocation1 + $0x20] sm:$0xff pattern:$0x75316420]
    %1600 = vrot.lane.b32.xlu0 %v1595, 78
    %v1601 = vpop.permute.xlu0 %1600
    %1602 = vrot.lane.b32.xlu0 %v1596, 78
    %v1603 = vpop.permute.xlu0 %1602
    %1604 = vrot.lane.b32.xlu0 %v1597, 78
    %v1605 = vpop.permute.xlu0 %1604
    %1606 = vrot.lane.b32.xlu0 %v1598, 78
    %v1607 = vpop.permute.xlu0 %1606
    %1608 = vrot.lane.b32.xlu0 %v1599, 78
    %v1609 = vpop.permute.xlu0 %1608
    %v1610 = vsel %vm634, %v1601, %v1603
    %v1611 = vsel %vm634, %v1603, %v1605
    %v1612 = vsel %vm634, %v1605, %v1607
    %v1613 = vsel %vm634, %v1607, %v1609
    %1618 = vst [vmem:[#allocation2 + $0x100] sm:$0xf0] %v1610
    %1619 = vst [vmem:[#allocation2 + $0x108] sm:$0xf0] %v1611
    %1620 = vst [vmem:[#allocation2 + $0x110] sm:$0xf0] %v1612
    %1621 = vst [vmem:[#allocation2 + $0x118] sm:$0xf0] %v1613
    %1622 = vst [vmem:[#allocation1] ss:$2 sm:$0xff] %v1048
    %s1623 = scalar_lea.vmem [#allocation1], 16
    %1624 = vst [vmem:[%s1623] ss:$2 sm:$0xff] %v1049
    %s1625 = scalar_lea.vmem [#allocation1], 32
    %1626 = vst [vmem:[%s1625] ss:$2 sm:$0xff] %v1050
    %v1627 = vld.sshfl [vmem:[#allocation1] sm:$0xff pattern:$0x75316420]
    %v1628 = vld.sshfl [vmem:[#allocation1 + $0x8] sm:$0xff pattern:$0x75316420]
    %v1629 = vld.sshfl [vmem:[#allocation1 + $0x10] sm:$0xff pattern:$0x75316420]
    %v1630 = vld.sshfl [vmem:[#allocation1 + $0x18] sm:$0xff pattern:$0x75316420]
    %v1631 = vld.sshfl [vmem:[#allocation1 + $0x20] sm:$0xff pattern:$0x75316420]
    %1632 = vrot.lane.b32.xlu0 %v1627, 77
    %v1633 = vpop.permute.xlu0 %1632
    %1634 = vrot.lane.b32.xlu0 %v1628, 77
    %v1635 = vpop.permute.xlu0 %1634
    %1636 = vrot.lane.b32.xlu0 %v1629, 77
    %v1637 = vpop.permute.xlu0 %1636
    %1638 = vrot.lane.b32.xlu0 %v1630, 77
    %v1639 = vpop.permute.xlu0 %1638
    %1640 = vrot.lane.b32.xlu0 %v1631, 77
    %v1641 = vpop.permute.xlu0 %1640
    %v1642 = vsel %vm667, %v1633, %v1635
    %v1643 = vsel %vm667, %v1635, %v1637
    %v1644 = vsel %vm667, %v1637, %v1639
    %v1645 = vsel %vm667, %v1639, %v1641
    %1650 = vst [vmem:[#allocation2 + $0x120] sm:$0xf] %v1642
    %1651 = vst [vmem:[#allocation2 + $0x128] sm:$0xf] %v1643
    %1652 = vst [vmem:[#allocation2 + $0x130] sm:$0xf] %v1644
    %1653 = vst [vmem:[#allocation2 + $0x138] sm:$0xf] %v1645
    %s1654 = scalar_lea.vmem [#allocation1], 1
    %1655 = vst [vmem:[%s1654] ss:$2 sm:$0xff] %v1048
    %s1656 = scalar_lea.vmem [#allocation1], 17
    %1657 = vst [vmem:[%s1656] ss:$2 sm:$0xff] %v1049
    %s1658 = scalar_lea.vmem [#allocation1], 33
    %1659 = vst [vmem:[%s1658] ss:$2 sm:$0xff] %v1050
    %v1660 = vld.sshfl [vmem:[#allocation1] sm:$0xff pattern:$0x75316420]
    %v1661 = vld.sshfl [vmem:[#allocation1 + $0x8] sm:$0xff pattern:$0x75316420]
    %v1662 = vld.sshfl [vmem:[#allocation1 + $0x10] sm:$0xff pattern:$0x75316420]
    %v1663 = vld.sshfl [vmem:[#allocation1 + $0x18] sm:$0xff pattern:$0x75316420]
    %v1664 = vld.sshfl [vmem:[#allocation1 + $0x20] sm:$0xff pattern:$0x75316420]
    %1665 = vrot.lane.b32.xlu0 %v1660, 76
    %v1666 = vpop.permute.xlu0 %1665
    %1667 = vrot.lane.b32.xlu0 %v1661, 76
    %v1668 = vpop.permute.xlu0 %1667
    %1669 = vrot.lane.b32.xlu0 %v1662, 76
    %v1670 = vpop.permute.xlu0 %1669
    %1671 = vrot.lane.b32.xlu0 %v1663, 76
    %v1672 = vpop.permute.xlu0 %1671
    %1673 = vrot.lane.b32.xlu0 %v1664, 76
    %v1674 = vpop.permute.xlu0 %1673
    %v1675 = vsel %vm701, %v1666, %v1668
    %v1676 = vsel %vm701, %v1668, %v1670
    %v1677 = vsel %vm701, %v1670, %v1672
    %v1678 = vsel %vm701, %v1672, %v1674
    %1683 = vst [vmem:[#allocation2 + $0x120] sm:$0xf0] %v1675
    %1684 = vst [vmem:[#allocation2 + $0x128] sm:$0xf0] %v1676
    %1685 = vst [vmem:[#allocation2 + $0x130] sm:$0xf0] %v1677
    %1686 = vst [vmem:[#allocation2 + $0x138] sm:$0xf0] %v1678
    %1687 = vst [vmem:[#allocation1] ss:$2 sm:$0xff] %v1048
    %s1688 = scalar_lea.vmem [#allocation1], 16
    %1689 = vst [vmem:[%s1688] ss:$2 sm:$0xff] %v1049
    %s1690 = scalar_lea.vmem [#allocation1], 32
    %1691 = vst [vmem:[%s1690] ss:$2 sm:$0xff] %v1050
    %v1692 = vld.sshfl [vmem:[#allocation1] sm:$0xff pattern:$0x75316420]
    %v1693 = vld.sshfl [vmem:[#allocation1 + $0x8] sm:$0xff pattern:$0x75316420]
    %v1694 = vld.sshfl [vmem:[#allocation1 + $0x10] sm:$0xff pattern:$0x75316420]
    %v1695 = vld.sshfl [vmem:[#allocation1 + $0x18] sm:$0xff pattern:$0x75316420]
    %v1696 = vld.sshfl [vmem:[#allocation1 + $0x20] sm:$0xff pattern:$0x75316420]
    %1697 = vrot.lane.b32.xlu0 %v1692, 64
    %v1698 = vpop.permute.xlu0 %1697
    %1699 = vrot.lane.b32.xlu0 %v1693, 64
    %v1700 = vpop.permute.xlu0 %1699
    %1701 = vrot.lane.b32.xlu0 %v1694, 64
    %v1702 = vpop.permute.xlu0 %1701
    %1703 = vrot.lane.b32.xlu0 %v1695, 64
    %v1704 = vpop.permute.xlu0 %1703
    %1705 = vrot.lane.b32.xlu0 %v1696, 64
    %v1706 = vpop.permute.xlu0 %1705
    %v1707 = vsel %vm734, %v1698, %v1700
    %v1708 = vsel %vm734, %v1700, %v1702
    %v1709 = vsel %vm734, %v1702, %v1704
    %v1710 = vsel %vm734, %v1704, %v1706
    %1715 = vst [vmem:[#allocation2 + $0x140] sm:$0xf] %v1707
    %1716 = vst [vmem:[#allocation2 + $0x148] sm:$0xf] %v1708
    %1717 = vst [vmem:[#allocation2 + $0x150] sm:$0xf] %v1709
    %1718 = vst [vmem:[#allocation2 + $0x158] sm:$0xf] %v1710
    %s1719 = scalar_lea.vmem [#allocation1], 1
    %1720 = vst [vmem:[%s1719] ss:$2 sm:$0xff] %v1048
    %s1721 = scalar_lea.vmem [#allocation1], 17
    %1722 = vst [vmem:[%s1721] ss:$2 sm:$0xff] %v1049
    %s1723 = scalar_lea.vmem [#allocation1], 33
    %1724 = vst [vmem:[%s1723] ss:$2 sm:$0xff] %v1050
    %v1725 = vld.sshfl [vmem:[#allocation1] sm:$0xff pattern:$0x75316420]
    %v1726 = vld.sshfl [vmem:[#allocation1 + $0x8] sm:$0xff pattern:$0x75316420]
    %v1727 = vld.sshfl [vmem:[#allocation1 + $0x10] sm:$0xff pattern:$0x75316420]
    %v1728 = vld.sshfl [vmem:[#allocation1 + $0x18] sm:$0xff pattern:$0x75316420]
    %v1729 = vld.sshfl [vmem:[#allocation1 + $0x20] sm:$0xff pattern:$0x75316420]
    %1730 = vrot.lane.b32.xlu0 %v1725, 63
    %v1731 = vpop.permute.xlu0 %1730
    %1732 = vrot.lane.b32.xlu0 %v1726, 63
    %v1733 = vpop.permute.xlu0 %1732
    %1734 = vrot.lane.b32.xlu0 %v1727, 63
    %v1735 = vpop.permute.xlu0 %1734
    %1736 = vrot.lane.b32.xlu0 %v1728, 63
    %v1737 = vpop.permute.xlu0 %1736
    %1738 = vrot.lane.b32.xlu0 %v1729, 63
    %v1739 = vpop.permute.xlu0 %1738
    %v1740 = vsel %vm768, %v1731, %v1733
    %v1741 = vsel %vm768, %v1733, %v1735
    %v1742 = vsel %vm768, %v1735, %v1737
    %v1743 = vsel %vm768, %v1737, %v1739
    %1748 = vst [vmem:[#allocation2 + $0x140] sm:$0xf0] %v1740
    %1749 = vst [vmem:[#allocation2 + $0x148] sm:$0xf0] %v1741
    %1750 = vst [vmem:[#allocation2 + $0x150] sm:$0xf0] %v1742
    %1751 = vst [vmem:[#allocation2 + $0x158] sm:$0xf0] %v1743
    %1752 = vst [vmem:[#allocation1] ss:$2 sm:$0xff] %v1048
    %s1753 = scalar_lea.vmem [#allocation1], 16
    %1754 = vst [vmem:[%s1753] ss:$2 sm:$0xff] %v1049
    %s1755 = scalar_lea.vmem [#allocation1], 32
    %1756 = vst [vmem:[%s1755] ss:$2 sm:$0xff] %v1050
    %v1757 = vld.sshfl [vmem:[#allocation1] sm:$0xff pattern:$0x75316420]
    %v1758 = vld.sshfl [vmem:[#allocation1 + $0x8] sm:$0xff pattern:$0x75316420]
    %v1759 = vld.sshfl [vmem:[#allocation1 + $0x10] sm:$0xff pattern:$0x75316420]
    %v1760 = vld.sshfl [vmem:[#allocation1 + $0x18] sm:$0xff pattern:$0x75316420]
    %v1761 = vld.sshfl [vmem:[#allocation1 + $0x20] sm:$0xff pattern:$0x75316420]
    %1762 = vrot.lane.b32.xlu0 %v1757, 62
    %v1763 = vpop.permute.xlu0 %1762
    %1764 = vrot.lane.b32.xlu0 %v1758, 62
    %v1765 = vpop.permute.xlu0 %1764
    %1766 = vrot.lane.b32.xlu0 %v1759, 62
    %v1767 = vpop.permute.xlu0 %1766
    %1768 = vrot.lane.b32.xlu0 %v1760, 62
    %v1769 = vpop.permute.xlu0 %1768
    %1770 = vrot.lane.b32.xlu0 %v1761, 62
    %v1771 = vpop.permute.xlu0 %1770
    %v1772 = vsel %vm801, %v1763, %v1765
    %v1773 = vsel %vm801, %v1765, %v1767
    %v1774 = vsel %vm801, %v1767, %v1769
    %v1775 = vsel %vm801, %v1769, %v1771
    %1780 = vst [vmem:[#allocation2 + $0x160] sm:$0xf] %v1772
    %1781 = vst [vmem:[#allocation2 + $0x168] sm:$0xf] %v1773
    %1782 = vst [vmem:[#allocation2 + $0x170] sm:$0xf] %v1774
    %1783 = vst [vmem:[#allocation2 + $0x178] sm:$0xf] %v1775
    %s1784 = scalar_lea.vmem [#allocation1], 1
    %1785 = vst [vmem:[%s1784] ss:$2 sm:$0xff] %v1048
    %s1786 = scalar_lea.vmem [#allocation1], 17
    %1787 = vst [vmem:[%s1786] ss:$2 sm:$0xff] %v1049
    %s1788 = scalar_lea.vmem [#allocation1], 33
    %1789 = vst [vmem:[%s1788] ss:$2 sm:$0xff] %v1050
    %v1790 = vld.sshfl [vmem:[#allocation1] sm:$0xff pattern:$0x75316420]
    %v1791 = vld.sshfl [vmem:[#allocation1 + $0x8] sm:$0xff pattern:$0x75316420]
    %v1792 = vld.sshfl [vmem:[#allocation1 + $0x10] sm:$0xff pattern:$0x75316420]
    %v1793 = vld.sshfl [vmem:[#allocation1 + $0x18] sm:$0xff pattern:$0x75316420]
    %v1794 = vld.sshfl [vmem:[#allocation1 + $0x20] sm:$0xff pattern:$0x75316420]
    %1795 = vrot.lane.b32.xlu0 %v1790, 61
    %v1796 = vpop.permute.xlu0 %1795
    %1797 = vrot.lane.b32.xlu0 %v1791, 61
    %v1798 = vpop.permute.xlu0 %1797
    %1799 = vrot.lane.b32.xlu0 %v1792, 61
    %v1800 = vpop.permute.xlu0 %1799
    %1801 = vrot.lane.b32.xlu0 %v1793, 61
    %v1802 = vpop.permute.xlu0 %1801
    %1803 = vrot.lane.b32.xlu0 %v1794, 61
    %v1804 = vpop.permute.xlu0 %1803
    %v1805 = vsel %vm835, %v1796, %v1798
    %v1806 = vsel %vm835, %v1798, %v1800
    %v1807 = vsel %vm835, %v1800, %v1802
    %v1808 = vsel %vm835, %v1802, %v1804
    %1813 = vst [vmem:[#allocation2 + $0x160] sm:$0xf0] %v1805
    %1814 = vst [vmem:[#allocation2 + $0x168] sm:$0xf0] %v1806
    %1815 = vst [vmem:[#allocation2 + $0x170] sm:$0xf0] %v1807
    %1816 = vst [vmem:[#allocation2 + $0x178] sm:$0xf0] %v1808
    %1817 = vst [vmem:[#allocation1] ss:$2 sm:$0xff] %v1048
    %s1818 = scalar_lea.vmem [#allocation1], 16
    %1819 = vst [vmem:[%s1818] ss:$2 sm:$0xff] %v1049
    %s1820 = scalar_lea.vmem [#allocation1], 32
    %1821 = vst [vmem:[%s1820] ss:$2 sm:$0xff] %v1050
    %v1822 = vld.sshfl [vmem:[#allocation1] sm:$0xff pattern:$0x75316420]
    %v1823 = vld.sshfl [vmem:[#allocation1 + $0x8] sm:$0xff pattern:$0x75316420]
    %v1824 = vld.sshfl [vmem:[#allocation1 + $0x10] sm:$0xff pattern:$0x75316420]
    %v1825 = vld.sshfl [vmem:[#allocation1 + $0x18] sm:$0xff pattern:$0x75316420]
    %v1826 = vld.sshfl [vmem:[#allocation1 + $0x20] sm:$0xff pattern:$0x75316420]
    %1827 = vrot.lane.b32.xlu0 %v1822, 60
    %v1828 = vpop.permute.xlu0 %1827
    %1829 = vrot.lane.b32.xlu0 %v1823, 60
    %v1830 = vpop.permute.xlu0 %1829
    %1831 = vrot.lane.b32.xlu0 %v1824, 60
    %v1832 = vpop.permute.xlu0 %1831
    %1833 = vrot.lane.b32.xlu0 %v1825, 60
    %v1834 = vpop.permute.xlu0 %1833
    %1835 = vrot.lane.b32.xlu0 %v1826, 60
    %v1836 = vpop.permute.xlu0 %1835
    %v1837 = vsel %vm868, %v1828, %v1830
    %v1838 = vsel %vm868, %v1830, %v1832
    %v1839 = vsel %vm868, %v1832, %v1834
    %v1840 = vsel %vm868, %v1834, %v1836
    %1845 = vst [vmem:[#allocation2 + $0x180] sm:$0xf] %v1837
    %1846 = vst [vmem:[#allocation2 + $0x188] sm:$0xf] %v1838
    %1847 = vst [vmem:[#allocation2 + $0x190] sm:$0xf] %v1839
    %1848 = vst [vmem:[#allocation2 + $0x198] sm:$0xf] %v1840
    %v1849 = vld [vmem:[#allocation9] sm:$0xf]
    %v1850 = vld [vmem:[#allocation2] sm:$0xff]
    %v1851 = vld [vmem:[#allocation2 + $0x8] sm:$0xff]
    %v1852 = vld [vmem:[#allocation2 + $0x10] sm:$0xff]
    %v1853 = vld [vmem:[#allocation2 + $0x18] sm:$0xff]
    %v1854 = vld [vmem:[#allocation2 + $0x20] sm:$0xff]
    %v1855 = vld [vmem:[#allocation2 + $0x28] sm:$0xff]
    %v1856 = vld [vmem:[#allocation2 + $0x30] sm:$0xff]
    %v1857 = vld [vmem:[#allocation2 + $0x38] sm:$0xff]
    %v1858 = vld [vmem:[#allocation2 + $0x40] sm:$0xff]
    %v1859 = vld [vmem:[#allocation2 + $0x48] sm:$0xff]
    %v1860 = vld [vmem:[#allocation2 + $0x50] sm:$0xff]
    %v1861 = vld [vmem:[#allocation2 + $0x58] sm:$0xff]
    %v1862 = vld [vmem:[#allocation2 + $0x60] sm:$0xff]
    %v1863 = vld [vmem:[#allocation2 + $0x68] sm:$0xff]
    %v1864 = vld [vmem:[#allocation2 + $0x70] sm:$0xff]
    %v1865 = vld [vmem:[#allocation2 + $0x78] sm:$0xff]
    %v1866 = vld [vmem:[#allocation2 + $0x80] sm:$0xff]
    %v1867 = vld [vmem:[#allocation2 + $0x88] sm:$0xff]
    %v1868 = vld [vmem:[#allocation2 + $0x90] sm:$0xff]
    %v1869 = vld [vmem:[#allocation2 + $0x98] sm:$0xff]
    %v1870 = vld [vmem:[#allocation2 + $0xa0] sm:$0xff]
    %v1871 = vld [vmem:[#allocation2 + $0xa8] sm:$0xff]
    %v1872 = vld [vmem:[#allocation2 + $0xb0] sm:$0xff]
    %v1873 = vld [vmem:[#allocation2 + $0xb8] sm:$0xff]
    %v1874 = vld [vmem:[#allocation2 + $0xc0] sm:$0xff]
    %v1875 = vld [vmem:[#allocation2 + $0xc8] sm:$0xff]
    %v1876 = vld [vmem:[#allocation2 + $0xd0] sm:$0xff]
    %v1877 = vld [vmem:[#allocation2 + $0xd8] sm:$0xff]
    %v1878 = vld [vmem:[#allocation2 + $0xe0] sm:$0xff]
    %v1879 = vld [vmem:[#allocation2 + $0xe8] sm:$0xff]
    %v1880 = vld [vmem:[#allocation2 + $0xf0] sm:$0xff]
    %v1881 = vld [vmem:[#allocation2 + $0xf8] sm:$0xff]
    %v1882 = vld [vmem:[#allocation2 + $0x100] sm:$0xff]
    %v1883 = vld [vmem:[#allocation2 + $0x108] sm:$0xff]
    %v1884 = vld [vmem:[#allocation2 + $0x110] sm:$0xff]
    %v1885 = vld [vmem:[#allocation2 + $0x118] sm:$0xff]
    %v1886 = vld [vmem:[#allocation2 + $0x120] sm:$0xff]
    %v1887 = vld [vmem:[#allocation2 + $0x128] sm:$0xff]
    %v1888 = vld [vmem:[#allocation2 + $0x130] sm:$0xff]
    %v1889 = vld [vmem:[#allocation2 + $0x138] sm:$0xff]
    %v1890 = vld [vmem:[#allocation2 + $0x140] sm:$0xff]
    %v1891 = vld [vmem:[#allocation2 + $0x148] sm:$0xff]
    %v1892 = vld [vmem:[#allocation2 + $0x150] sm:$0xff]
    %v1893 = vld [vmem:[#allocation2 + $0x158] sm:$0xff]
    %v1894 = vld [vmem:[#allocation2 + $0x160] sm:$0xff]
    %v1895 = vld [vmem:[#allocation2 + $0x168] sm:$0xff]
    %v1896 = vld [vmem:[#allocation2 + $0x170] sm:$0xff]
    %v1897 = vld [vmem:[#allocation2 + $0x178] sm:$0xff]
    %v1898 = vld [vmem:[#allocation2 + $0x180] sm:$0xf]
    %v1899 = vld [vmem:[#allocation2 + $0x188] sm:$0xf]
    %v1900 = vld [vmem:[#allocation2 + $0x190] sm:$0xf]
    %v1901 = vld [vmem:[#allocation2 + $0x198] sm:$0xf]
    %1902 = vst [vmem:[#allocation1] ss:$2 sm:$0xff] %v56
    %s1903 = scalar_lea.vmem [#allocation1], 16
    %1904 = vst [vmem:[%s1903] ss:$2 sm:$0xff] %v57
    %s1905 = scalar_lea.vmem [#allocation1], 32
    %1906 = vst [vmem:[%s1905] ss:$2 sm:$0xff] %v58
    %v1907 = vld.sshfl [vmem:[#allocation1] sm:$0xff pattern:$0x75316420]
    %v1908 = vld.sshfl [vmem:[#allocation1 + $0x8] sm:$0xff pattern:$0x75316420]
    %v1909 = vld.sshfl [vmem:[#allocation1 + $0x10] sm:$0xff pattern:$0x75316420]
    %v1910 = vld.sshfl [vmem:[#allocation1 + $0x18] sm:$0xff pattern:$0x75316420]
    %v1911 = vld.sshfl [vmem:[#allocation1 + $0x20] sm:$0xff pattern:$0x75316420]
    %1912 = vrot.lane.b32.xlu0 %v1907, 60
    %v1913 = vpop.permute.xlu0 %1912
    %1914 = vrot.lane.b32.xlu0 %v1908, 60
    %v1915 = vpop.permute.xlu0 %1914
    %1916 = vrot.lane.b32.xlu0 %v1909, 60
    %v1917 = vpop.permute.xlu0 %1916
    %1918 = vrot.lane.b32.xlu0 %v1910, 60
    %v1919 = vpop.permute.xlu0 %1918
    %1920 = vrot.lane.b32.xlu0 %v1911, 60
    %v1921 = vpop.permute.xlu0 %1920
    %v1922 = vsel %vm868, %v1913, %v1915
    %v1923 = vsel %vm868, %v1915, %v1917
    %v1924 = vsel %vm868, %v1917, %v1919
    %v1925 = vsel %vm868, %v1919, %v1921
    %v1931 = vsel %vm934, %v1849, 0
    %v1934 = vsel %vm938, %v1898, 0
    %v1937 = vsel %vm938, %v1899, 0
    %v1940 = vsel %vm938, %v1900, 0
    %v1943 = vsel %vm938, %v1901, 0
    %1945 = vmatpush.msra.mxu0 0.0
    %1946 = vmatpush.msra.mxu0 0.0
    %1947 = vmatpush.msra.mxu0 0.0
    %1948 = vmatpush.msra.mxu0 %v1934
    %1949 = vmatpush.msra.mxu0 %v1894
    %1950 = vmatpush.msra.mxu0 %v1890
    %1951 = vmatpush.msra.mxu0 %v1886
    %1952 = vmatpush.msra.mxu0 %v1882
    %1953 = vmatpush.msra.mxu0 %v1878
    %1954 = vmatpush.msra.mxu0 %v1874
    %1955 = vmatpush.msra.mxu0 %v1870
    %1956 = vmatpush.msra.mxu0 %v1866
    %1957 = vmatpush.msra.mxu0 %v1862
    %1958 = vmatpush.msra.mxu0 %v1858
    %1959 = vmatpush.msra.mxu0 %v1854
    %1960 = vmatpush.msra.mxu0 %v1850
    %1961 = vmatmul.f32.gmra.mxu0 %v1931
    %v1962 = vpop.f32.mrf.mxu0
    %v1963 = vadd.f32 %v1922, %v1962
    %1964 = vdwg.mxu0
    %1965 = vmatpush.msra.mxu0 0.0
    %1966 = vmatpush.msra.mxu0 0.0
    %1967 = vmatpush.msra.mxu0 0.0
    %1968 = vmatpush.msra.mxu0 %v1937
    %1969 = vmatpush.msra.mxu0 %v1895
    %1970 = vmatpush.msra.mxu0 %v1891
    %1971 = vmatpush.msra.mxu0 %v1887
    %1972 = vmatpush.msra.mxu0 %v1883
    %1973 = vmatpush.msra.mxu0 %v1879
    %1974 = vmatpush.msra.mxu0 %v1875
    %1975 = vmatpush.msra.mxu0 %v1871
    %1976 = vmatpush.msra.mxu0 %v1867
    %1977 = vmatpush.msra.mxu0 %v1863
    %1978 = vmatpush.msra.mxu0 %v1859
    %1979 = vmatpush.msra.mxu0 %v1855
    %1980 = vmatpush.msra.mxu0 %v1851
    %1981 = vmatmul.f32.gmra.mxu0 %v1931
    %v1982 = vpop.f32.mrf.mxu0
    %v1983 = vadd.f32 %v1923, %v1982
    %1984 = vdwg.mxu0
    %1985 = vmatpush.msra.mxu0 0.0
    %1986 = vmatpush.msra.mxu0 0.0
    %1987 = vmatpush.msra.mxu0 0.0
    %1988 = vmatpush.msra.mxu0 %v1940
    %1989 = vmatpush.msra.mxu0 %v1896
    %1990 = vmatpush.msra.mxu0 %v1892
    %1991 = vmatpush.msra.mxu0 %v1888
    %1992 = vmatpush.msra.mxu0 %v1884
    %1993 = vmatpush.msra.mxu0 %v1880
    %1994 = vmatpush.msra.mxu0 %v1876
    %1995 = vmatpush.msra.mxu0 %v1872
    %1996 = vmatpush.msra.mxu0 %v1868
    %1997 = vmatpush.msra.mxu0 %v1864
    %1998 = vmatpush.msra.mxu0 %v1860
    %1999 = vmatpush.msra.mxu0 %v1856
    %2000 = vmatpush.msra.mxu0 %v1852
    %2001 = vmatmul.f32.gmra.mxu0 %v1931
    %v2002 = vpop.f32.mrf.mxu0
    %v2003 = vadd.f32 %v1924, %v2002
    %2004 = vdwg.mxu0
    %2005 = vmatpush.msra.mxu0 0.0
    %2006 = vmatpush.msra.mxu0 0.0
    %2007 = vmatpush.msra.mxu0 0.0
    %2008 = vmatpush.msra.mxu0 %v1943
    %2009 = vmatpush.msra.mxu0 %v1897
    %2010 = vmatpush.msra.mxu0 %v1893
    %2011 = vmatpush.msra.mxu0 %v1889
    %2012 = vmatpush.msra.mxu0 %v1885
    %2013 = vmatpush.msra.mxu0 %v1881
    %2014 = vmatpush.msra.mxu0 %v1877
    %2015 = vmatpush.msra.mxu0 %v1873
    %2016 = vmatpush.msra.mxu0 %v1869
    %2017 = vmatpush.msra.mxu0 %v1865
    %2018 = vmatpush.msra.mxu0 %v1861
    %2019 = vmatpush.msra.mxu0 %v1857
    %2020 = vmatpush.msra.mxu0 %v1853
    %2021 = vmatmul.f32.gmra.mxu0 %v1931
    %v2022 = vpop.f32.mrf.mxu0
    %v2023 = vadd.f32 %v1925, %v2022
    %2024 = vdwg.mxu0
    %v2025 = vmax.f32 %v1963, 0.0
    %v2026 = vmax.f32 %v1983, 0.0
    %v2027 = vmax.f32 %v2003, 0.0
    %v2028 = vmax.f32 %v2023, 0.0
    %v2033 = vrot.slane %v2026, 4
    %v2034 = vrot.slane %v2028, 4
    %v2035 = vsel %vm938, %v2025, %v2033
    %v2036 = vsel %vm938, %v2027, %v2034
    %2039 = vst [vmem:[#allocation10] sm:$0xff] %v2035
    %2040 = vst [vmem:[#allocation10 + $0x8] sm:$0xff] %v2036
    // Predicated region
    $region26: #{tpu_custom_call.1} parent=1 // pred_check
      _
    $region27: #{tpu_custom_call.1} parent=1 // pred_check_branch
      %2042 = sbr.rel (0) target = $region29
    $region28: #{tpu_custom_call.1} parent=1 // pred_region
      %2044 = vsyncadd [#allocation6], 0
      %s2046 = sshll.u32 [#allocation10], 4
      %s2047 = int_to_ptr.vmem [resolvable:$true] %s2046
      %s2048 = sshll.u32 %s3, 4
      %s2049 = int_to_ptr.hbm [resolvable:$true] %s2048
      %2051 = dma.vmem_to_hbm [thread:$0]  %s2047, 256, %s2049, [#allocation6]
    $region29: #{tpu_custom_call.1} parent=1 // pred_fallthru
      _
    // Predicated region
    $region30: #{tpu_custom_call.1} parent=1 // pred_check
      _
    $region31: #{tpu_custom_call.1} parent=1 // pred_check_branch
      %2053 = sbr.rel (0) target = $region33
    $region32: #{tpu_custom_call.1} parent=1 // pred_region
      %2055 = dma.done [#allocation6], 256
    $region33: #{tpu_custom_call.1} parent=1 // pred_fallthru
      _
    %2056 = vsyncpa [#allocation5], 1
    %2057 = vsyncpa [#allocation8], 1
    %2058 = vsyncpa [#allocation6], 1

</llo_original>
